<compile_context>
chip_gen: v5e
topology: v5e:2x2
jax: 0.10.0
libtpu: 0.0.40
codegen_flags: <defaults>
</compile_context>

<pallas_src>
import functools

import jax
import jax.numpy as jnp
from jax.experimental import pallas as pl
from jax.experimental.pallas import tpu as pltpu

_VMEM_LIMIT = 48 * 1024 * 1024  # headroom under v7x's 64 MiB/TC


def _round_up(x, m):
    return ((x + m - 1) // m) * m


# ----------------------------- kernels --------------------------------------

def transform_kernel(x_ref, w_ref, o_ref):
    """o = x @ w  (feature-side matmul, computed once, row-tiled)."""
    o_ref[...] = jnp.dot(x_ref[...], w_ref[...],
                         preferred_element_type=jnp.float32).astype(o_ref.dtype)


def layer1_agg_kernel(a_ref, xw_ref, b1_ref, w2_ref, o_ref, acc_ref):
    """o = relu(sum_k A[i,k] @ XW[k] + b1) @ W2   (K-reduction, fused finalize)."""
    k = pl.program_id(1)

    @pl.when(k == 0)
    def _():
        acc_ref[...] = jnp.zeros_like(acc_ref)

    acc_ref[...] += jnp.dot(a_ref[...], xw_ref[...],
                            preferred_element_type=jnp.float32)

    @pl.when(k == pl.num_programs(1) - 1)
    def _():
        h1 = jnp.maximum(acc_ref[...] + b1_ref[...], 0.0)
        o_ref[...] = jnp.dot(h1.astype(w2_ref.dtype), w2_ref[...],
                             preferred_element_type=jnp.float32
                             ).astype(o_ref.dtype)


def layer2_agg_kernel(a_ref, hw_ref, b2_ref, h_ref, ls_ref, acc_ref, *,
                      dim_out):
    """h = sum_k A[i,k] @ HW[k] + b2; log_softmax over the first dim_out lanes."""
    k = pl.program_id(1)

    @pl.when(k == 0)
    def _():
        acc_ref[...] = jnp.zeros_like(acc_ref)

    acc_ref[...] += jnp.dot(a_ref[...], hw_ref[...],
                            preferred_element_type=jnp.float32)

    @pl.when(k == pl.num_programs(1) - 1)
    def _():
        h2 = acc_ref[...] + b2_ref[...]
        h_ref[...] = h2
        # Mask padded feature lanes so they don't corrupt the softmax.
        lane = jax.lax.broadcasted_iota(jnp.int32, h2.shape, 1)
        valid = lane < dim_out
        m = jnp.max(jnp.where(valid, h2, -jnp.inf), axis=1, keepdims=True)
        z = h2 - m
        e = jnp.where(valid, jnp.exp(z), 0.0)
        lse = jnp.log(jnp.sum(e, axis=1, keepdims=True))
        ls_ref[...] = z - lse


# ------------------------------ glue ----------------------------------------

def build_normalized_adjacency_padded(edge_index, num_nodes, n_pad):
    """Dense D^{-1/2} (A + I) D^{-1/2}, built directly at padded size (n_pad, n_pad).

    Parallel (duplicate) edges are summed (matching GCNConv's scatter-add);
    self-loops are normalized to a single unit-weight loop per real node
    (add_remaining_self_loops semantics with fill_value=1).  Padded rows/cols
    stay all-zero (deg=0 -> dinv=0).
    """
    src, dst = edge_index[0], edge_index[1]
    w = jnp.where(src == dst, 0.0, 1.0).astype(jnp.float32)
    adj = jnp.zeros((n_pad, n_pad), jnp.float32).at[dst, src].add(w)
    loop = (jnp.arange(n_pad) < num_nodes).astype(jnp.float32)
    adj = adj + jnp.diag(loop)
    deg = jnp.sum(adj, axis=1)
    dinv = jnp.where(deg > 0, jax.lax.rsqrt(deg), 0.0)
    return adj * dinv[:, None] * dinv[None, :]


def _gcn_forward_impl(x, edge_index, w1, b1, w2, b2, *, tile=512):
    n, dim_in = x.shape
    dim_h = w1.shape[1]
    dim_out = w2.shape[1]

    # lane-padded feature widths, tile-padded node count
    din_p = _round_up(dim_in, 128)
    dh_p = _round_up(dim_h, 128)
    do_p = _round_up(dim_out, 128)
    n_p = _round_up(n, 128)
    tm = min(tile, n_p)
    tk = tm
    n_p = _round_up(n_p, tm)

    a_hat = build_normalized_adjacency_padded(edge_index, n, n_p)
    a_pad = a_hat.astype(jnp.bfloat16)
    x_pad = jnp.zeros((n_p, din_p), jnp.bfloat16).at[:n, :dim_in].set(
        x.astype(jnp.bfloat16))
    w1_p = jnp.zeros((din_p, dh_p), jnp.bfloat16).at[:dim_in, :dim_h].set(
        w1.astype(jnp.bfloat16))
    w2_p = jnp.zeros((dh_p, do_p), jnp.bfloat16).at[:dim_h, :dim_out].set(
        w2.astype(jnp.bfloat16))
    b1_p = jnp.zeros((1, dh_p), jnp.float32).at[0, :dim_h].set(b1)
    b2_p = jnp.zeros((1, do_p), jnp.float32).at[0, :dim_out].set(b2)

    # ---- stage 0: XW1 = X @ W1 (small feature-side matmul, computed once) ---
    xw1 = pl.pallas_call(
        transform_kernel,
        out_shape=jax.ShapeDtypeStruct((n_p, dh_p), jnp.bfloat16),
        grid_spec=pltpu.PrefetchScalarGridSpec(
            num_scalar_prefetch=0,
            grid=(n_p // tm,),
            in_specs=[pl.BlockSpec((tm, din_p), lambda i: (i, 0)),
                      pl.BlockSpec((din_p, dh_p), lambda i: (0, 0))],
            out_specs=pl.BlockSpec((tm, dh_p), lambda i: (i, 0))),
        compiler_params=pltpu.CompilerParams(
            dimension_semantics=("parallel",),
            vmem_limit_bytes=_VMEM_LIMIT),
    )(x_pad, w1_p)

    # ---- stage 1: HW2 = relu(A_hat @ XW1 + b1) @ W2 (row-tiled, K-reduce) ---
    hw2 = pl.pallas_call(
        layer1_agg_kernel,
        out_shape=jax.ShapeDtypeStruct((n_p, do_p), jnp.bfloat16),
        grid_spec=pltpu.PrefetchScalarGridSpec(
            num_scalar_prefetch=0,
            grid=(n_p // tm, n_p // tk),
            in_specs=[pl.BlockSpec((tm, tk), lambda i, k: (i, k)),
                      pl.BlockSpec((tk, dh_p), lambda i, k: (k, 0)),
                      pl.BlockSpec((1, dh_p), lambda i, k: (0, 0)),
                      pl.BlockSpec((dh_p, do_p), lambda i, k: (0, 0))],
            out_specs=pl.BlockSpec((tm, do_p), lambda i, k: (i, 0)),
            scratch_shapes=[pltpu.VMEM((tm, dh_p), jnp.float32)]),
        compiler_params=pltpu.CompilerParams(
            dimension_semantics=("parallel", "arbitrary"),
            vmem_limit_bytes=_VMEM_LIMIT),
    )(a_pad, xw1, b1_p, w2_p)

    # ---- stage 2: h2 = A_hat @ HW2 + b2, plus masked log_softmax ------------
    h2_pad, ls_pad = pl.pallas_call(
        functools.partial(layer2_agg_kernel, dim_out=dim_out),
        out_shape=(jax.ShapeDtypeStruct((n_p, do_p), jnp.float32),
                   jax.ShapeDtypeStruct((n_p, do_p), jnp.float32)),
        grid_spec=pltpu.PrefetchScalarGridSpec(
            num_scalar_prefetch=0,
            grid=(n_p // tm, n_p // tk),
            in_specs=[pl.BlockSpec((tm, tk), lambda i, k: (i, k)),
                      pl.BlockSpec((tk, do_p), lambda i, k: (k, 0)),
                      pl.BlockSpec((1, do_p), lambda i, k: (0, 0))],
            out_specs=[pl.BlockSpec((tm, do_p), lambda i, k: (i, 0)),
                       pl.BlockSpec((tm, do_p), lambda i, k: (i, 0))],
            scratch_shapes=[pltpu.VMEM((tm, do_p), jnp.float32)]),
        compiler_params=pltpu.CompilerParams(
            dimension_semantics=("parallel", "arbitrary"),
            vmem_limit_bytes=_VMEM_LIMIT),
    )(a_pad, hw2, b2_p)

    return h2_pad[:n, :dim_out], ls_pad[:n, :dim_out]


# Single jitted graph: padding + adjacency normalization + 3 pallas_calls.
gcn_forward = jax.jit(_gcn_forward_impl, static_argnames=("tile",))


def reference_forward(x, edge_index, w1, b1, w2, b2):
    """Pure-JAX f32 reference for a sanity check."""
    n = x.shape[0]
    a_hat = build_normalized_adjacency_padded(edge_index, n, n)
    h1 = jnp.maximum(a_hat @ (x @ w1) + b1, 0.0)
    h2 = a_hat @ (h1 @ w2) + b2
    return h2, jax.nn.log_softmax(h2, axis=1)


def glorot(key, shape):
    fan_in, fan_out = shape
    limit = (6.0 / (fan_in + fan_out)) ** 0.5
    return jax.random.uniform(key, shape, jnp.float32, -limit, limit)


if __name__ == "__main__":
    # Small synthetic graph: N nodes, dim_in -> dim_h -> dim_out
    N, DIM_IN, DIM_H, DIM_OUT = 16, 8, 32, 4

    key = jax.random.PRNGKey(0)
    kx, ke, k1, k2 = jax.random.split(key, 4)

    x = jax.random.normal(kx, (N, DIM_IN), jnp.float32)

    # Deterministic random edges (directed), shape (2, E)
    E = 40
    edge_index = jax.random.randint(ke, (2, E), 0, N, jnp.int32)

    # Deterministic parameter init (GCNConv: glorot weight, zero bias)
    w1 = glorot(k1, (DIM_IN, DIM_H))
    b1 = jnp.zeros((DIM_H,), jnp.float32)
    w2 = glorot(k2, (DIM_H, DIM_OUT))
    b2 = jnp.zeros((DIM_OUT,), jnp.float32)

    h, log_sm = gcn_forward(x, edge_index, w1, b1, w2, b2)
    jax.block_until_ready((h, log_sm))

    h_ref, ls_ref = reference_forward(x, edge_index, w1, b1, w2, b2)
    # bf16 adjacency/weights with f32 accumulation -> a few 1e-3 abs error
    assert jnp.allclose(h, h_ref, atol=3e-2, rtol=3e-2)
    assert jnp.allclose(log_sm, ls_ref, atol=3e-2, rtol=3e-2)

    print("KERNEL_OK")
</pallas_src>

<mosaic_0001>
module attributes {stable_mosaic.version = 11 : i64} {
  func.func @transform_kernel(%arg0: i32, %arg1: memref<128x128xbf16, #tpu.memory_space<vmem>>, %arg2: memref<128x128xbf16, #tpu.memory_space<vmem>>, %arg3: memref<128x128xbf16, #tpu.memory_space<vmem>>) attributes {dimension_semantics = [#tpu.dimension_semantics<parallel>], iteration_bounds = array<i64: 1>, scalar_prefetch = 0 : i64, scratch_operands = 0 : i64, tpu.core_type = #tpu.core_type<tc>, window_params = [{transform_indices = @transform_0, window_bounds = array<i64: 128, 128>}, {pipeline_mode = #tpu.pipeline_mode<synchronous>, transform_indices = @transform_1, window_bounds = array<i64: 128, 128>}, {transform_indices = @transform_2, window_bounds = array<i64: 128, 128>}]} {
    %c0 = arith.constant 0 : index
    %c0_0 = arith.constant 0 : index
    %0 = vector.load %arg1[%c0, %c0_0] : memref<128x128xbf16, #tpu.memory_space<vmem>>, vector<128x128xbf16>
    %c0_1 = arith.constant 0 : index
    %c0_2 = arith.constant 0 : index
    %1 = vector.load %arg2[%c0_1, %c0_2] : memref<128x128xbf16, #tpu.memory_space<vmem>>, vector<128x128xbf16>
    %cst = arith.constant dense<0.000000e+00> : vector<128x128xf32>
    %2 = tpu.matmul %0, %1, %cst {dimension_numbers = #tpu.dot_dimension_numbers<[1], [0], [0], [1], [0, 0, 1, 1], [], []>} : vector<128x128xbf16>, vector<128x128xbf16>, vector<128x128xf32> -> vector<128x128xf32>
    %3 = arith.truncf %2 : vector<128x128xf32> to vector<128x128xbf16>
    %c0_3 = arith.constant 0 : index
    %c0_4 = arith.constant 0 : index
    %4 = vector.load %arg3[%c0_3, %c0_4] : memref<128x128xbf16, #tpu.memory_space<vmem>>, vector<128x128xbf16>
    tpu.vector_store %arg3[%c0_3, %c0_4], %3 {strides = array<i32>} : memref<128x128xbf16, #tpu.memory_space<vmem>>, vector<128x128xbf16>,
    return
  }
  func.func @transform_0(%arg0: i32) -> (i32, i32) {
    %c0_i32 = arith.constant 0 : i32
    %c0_i32_0 = arith.constant 0 : i32
    return %arg0, %c0_i32 : i32, i32
  }
  func.func @transform_1(%arg0: i32) -> (i32, i32) {
    %c0_i32 = arith.constant 0 : i32
    %c0_i32_0 = arith.constant 0 : i32
    %c0_i32_1 = arith.constant 0 : i32
    return %c0_i32, %c0_i32_0 : i32, i32
  }
  func.func @transform_2(%arg0: i32) -> (i32, i32) {
    %c0_i32 = arith.constant 0 : i32
    %c0_i32_0 = arith.constant 0 : i32
    return %arg0, %c0_i32 : i32, i32
  }
}

module attributes {stable_mosaic.version = 11 : i64} {
  func.func @layer1_agg_kernel(%arg0: i32, %arg1: i32, %arg2: memref<128x128xbf16, #tpu.memory_space<vmem>>, %arg3: memref<128x128xbf16, #tpu.memory_space<vmem>>, %arg4: memref<1x128xf32, #tpu.memory_space<vmem>>, %arg5: memref<128x128xbf16, #tpu.memory_space<vmem>>, %arg6: memref<128x128xbf16, #tpu.memory_space<vmem>>, %arg7: memref<128x128xf32, #tpu.memory_space<vmem>>) attributes {dimension_semantics = [#tpu.dimension_semantics<parallel>, #tpu.dimension_semantics<arbitrary>], iteration_bounds = array<i64: 1, 1>, scalar_prefetch = 0 : i64, scratch_operands = 1 : i64, tpu.core_type = #tpu.core_type<tc>, window_params = [{transform_indices = @transform_0, window_bounds = array<i64: 128, 128>}, {transform_indices = @transform_1, window_bounds = array<i64: 128, 128>}, {pipeline_mode = #tpu.pipeline_mode<synchronous>, transform_indices = @transform_2, window_bounds = array<i64: 1, 128>}, {pipeline_mode = #tpu.pipeline_mode<synchronous>, transform_indices = @transform_3, window_bounds = array<i64: 128, 128>}, {transform_indices = @transform_4, window_bounds = array<i64: 128, 128>}]} {
    %c0_i32 = arith.constant 0 : i32
    %0 = arith.cmpi eq, %arg1, %c0_i32 : i32
    %1 = arith.extui %0 : i1 to i32
    %c0_i32_0 = arith.constant 0 : i32
    %2 = arith.cmpi ne, %1, %c0_i32_0 : i32
    scf.if %2 {
      %cst_10 = arith.constant 0.000000e+00 : f32
      %12 = vector.broadcast %cst_10 : f32 to vector<128x128xf32>
      %c0_11 = arith.constant 0 : index
      %c0_12 = arith.constant 0 : index
      %13 = vector.load %arg7[%c0_11, %c0_12] : memref<128x128xf32, #tpu.memory_space<vmem>>, vector<128x128xf32>
      tpu.vector_store %arg7[%c0_11, %c0_12], %12 {strides = array<i32>} : memref<128x128xf32, #tpu.memory_space<vmem>>, vector<128x128xf32>,
    } else {
    }
    %c0 = arith.constant 0 : index
    %c0_1 = arith.constant 0 : index
    %3 = vector.load %arg7[%c0, %c0_1] : memref<128x128xf32, #tpu.memory_space<vmem>>, vector<128x128xf32>
    %c0_2 = arith.constant 0 : index
    %c0_3 = arith.constant 0 : index
    %4 = vector.load %arg2[%c0_2, %c0_3] : memref<128x128xbf16, #tpu.memory_space<vmem>>, vector<128x128xbf16>
    %c0_4 = arith.constant 0 : index
    %c0_5 = arith.constant 0 : index
    %5 = vector.load %arg3[%c0_4, %c0_5] : memref<128x128xbf16, #tpu.memory_space<vmem>>, vector<128x128xbf16>
    %cst = arith.constant dense<0.000000e+00> : vector<128x128xf32>
    %6 = tpu.matmul %4, %5, %cst {dimension_numbers = #tpu.dot_dimension_numbers<[1], [0], [0], [1], [0, 0, 1, 1], [], []>} : vector<128x128xbf16>, vector<128x128xbf16>, vector<128x128xf32> -> vector<128x128xf32>
    %7 = arith.addf %3, %6 : vector<128x128xf32>
    %c0_6 = arith.constant 0 : index
    %c0_7 = arith.constant 0 : index
    %8 = vector.load %arg7[%c0_6, %c0_7] : memref<128x128xf32, #tpu.memory_space<vmem>>, vector<128x128xf32>
    tpu.vector_store %arg7[%c0_6, %c0_7], %7 {strides = array<i32>} : memref<128x128xf32, #tpu.memory_space<vmem>>, vector<128x128xf32>,
    %c0_i32_8 = arith.constant 0 : i32
    %9 = arith.cmpi eq, %arg1, %c0_i32_8 : i32
    %10 = arith.extui %9 : i1 to i32
    %c0_i32_9 = arith.constant 0 : i32
    %11 = arith.cmpi ne, %10, %c0_i32_9 : i32
    scf.if %11 {
      %c0_10 = arith.constant 0 : index
      %c0_11 = arith.constant 0 : index
      %12 = vector.load %arg7[%c0_10, %c0_11] : memref<128x128xf32, #tpu.memory_space<vmem>>, vector<128x128xf32>
      %c0_12 = arith.constant 0 : index
      %c0_13 = arith.constant 0 : index
      %13 = vector.load %arg4[%c0_12, %c0_13] : memref<1x128xf32, #tpu.memory_space<vmem>>, vector<1x128xf32>
      %14 = vector.broadcast %13 : vector<1x128xf32> to vector<128x128xf32>
      %15 = arith.addf %12, %14 : vector<128x128xf32>
      %cst_14 = arith.constant 0.000000e+00 : f32
      %16 = vector.broadcast %cst_14 : f32 to vector<128x128xf32>
      %17 = arith.maximumf %15, %16 : vector<128x128xf32>
      %18 = arith.truncf %17 : vector<128x128xf32> to vector<128x128xbf16>
      %c0_15 = arith.constant 0 : index
      %c0_16 = arith.constant 0 : index
      %19 = vector.load %arg5[%c0_15, %c0_16] : memref<128x128xbf16, #tpu.memory_space<vmem>>, vector<128x128xbf16>
      %cst_17 = arith.constant dense<0.000000e+00> : vector<128x128xf32>
      %20 = tpu.matmul %18, %19, %cst_17 {dimension_numbers = #tpu.dot_dimension_numbers<[1], [0], [0], [1], [0, 0, 1, 1], [], []>} : vector<128x128xbf16>, vector<128x128xbf16>, vector<128x128xf32> -> vector<128x128xf32>
      %21 = arith.truncf %20 : vector<128x128xf32> to vector<128x128xbf16>
      %c0_18 = arith.constant 0 : index
      %c0_19 = arith.constant 0 : index
      %22 = vector.load %arg6[%c0_18, %c0_19] : memref<128x128xbf16, #tpu.memory_space<vmem>>, vector<128x128xbf16>
      tpu.vector_store %arg6[%c0_18, %c0_19], %21 {strides = array<i32>} : memref<128x128xbf16, #tpu.memory_space<vmem>>, vector<128x128xbf16>,
    } else {
    }
    return
  }
  func.func @transform_0(%arg0: i32, %arg1: i32) -> (i32, i32) {
    %c0_i32 = arith.constant 0 : i32
    return %arg0, %arg1 : i32, i32
  }
  func.func @transform_1(%arg0: i32, %arg1: i32) -> (i32, i32) {
    %c0_i32 = arith.constant 0 : i32
    %c0_i32_0 = arith.constant 0 : i32
    return %arg1, %c0_i32 : i32, i32
  }
  func.func @transform_2(%arg0: i32, %arg1: i32) -> (i32, i32) {
    %c0_i32 = arith.constant 0 : i32
    %c0_i32_0 = arith.constant 0 : i32
    %c0_i32_1 = arith.constant 0 : i32
    return %c0_i32, %c0_i32_0 : i32, i32
  }
  func.func @transform_3(%arg0: i32, %arg1: i32) -> (i32, i32) {
    %c0_i32 = arith.constant 0 : i32
    %c0_i32_0 = arith.constant 0 : i32
    %c0_i32_1 = arith.constant 0 : i32
    return %c0_i32, %c0_i32_0 : i32, i32
  }
  func.func @transform_4(%arg0: i32, %arg1: i32) -> (i32, i32) {
    %c0_i32 = arith.constant 0 : i32
    %c0_i32_0 = arith.constant 0 : i32
    return %arg0, %c0_i32 : i32, i32
  }
}

module attributes {stable_mosaic.version = 11 : i64} {
  func.func @layer2_agg_kernel(%arg0: i32, %arg1: i32, %arg2: memref<128x128xbf16, #tpu.memory_space<vmem>>, %arg3: memref<128x128xbf16, #tpu.memory_space<vmem>>, %arg4: memref<1x128xf32, #tpu.memory_space<vmem>>, %arg5: memref<128x128xf32, #tpu.memory_space<vmem>>, %arg6: memref<128x128xf32, #tpu.memory_space<vmem>>, %arg7: memref<128x128xf32, #tpu.memory_space<vmem>>) attributes {dimension_semantics = [#tpu.dimension_semantics<parallel>, #tpu.dimension_semantics<arbitrary>], iteration_bounds = array<i64: 1, 1>, scalar_prefetch = 0 : i64, scratch_operands = 1 : i64, tpu.core_type = #tpu.core_type<tc>, window_params = [{transform_indices = @transform_0, window_bounds = array<i64: 128, 128>}, {transform_indices = @transform_1, window_bounds = array<i64: 128, 128>}, {pipeline_mode = #tpu.pipeline_mode<synchronous>, transform_indices = @transform_2, window_bounds = array<i64: 1, 128>}, {transform_indices = @transform_3, window_bounds = array<i64: 128, 128>}, {transform_indices = @transform_4, window_bounds = array<i64: 128, 128>}]} {
    %c0_i32 = arith.constant 0 : i32
    %0 = arith.cmpi eq, %arg1, %c0_i32 : i32
    %1 = arith.extui %0 : i1 to i32
    %c0_i32_0 = arith.constant 0 : i32
    %2 = arith.cmpi ne, %1, %c0_i32_0 : i32
    scf.if %2 {
      %cst_10 = arith.constant 0.000000e+00 : f32
      %12 = vector.broadcast %cst_10 : f32 to vector<128x128xf32>
      %c0_11 = arith.constant 0 : index
      %c0_12 = arith.constant 0 : index
      %13 = vector.load %arg7[%c0_11, %c0_12] : memref<128x128xf32, #tpu.memory_space<vmem>>, vector<128x128xf32>
      tpu.vector_store %arg7[%c0_11, %c0_12], %12 {strides = array<i32>} : memref<128x128xf32, #tpu.memory_space<vmem>>, vector<128x128xf32>,
    } else {
    }
    %c0 = arith.constant 0 : index
    %c0_1 = arith.constant 0 : index
    %3 = vector.load %arg7[%c0, %c0_1] : memref<128x128xf32, #tpu.memory_space<vmem>>, vector<128x128xf32>
    %c0_2 = arith.constant 0 : index
    %c0_3 = arith.constant 0 : index
    %4 = vector.load %arg2[%c0_2, %c0_3] : memref<128x128xbf16, #tpu.memory_space<vmem>>, vector<128x128xbf16>
    %c0_4 = arith.constant 0 : index
    %c0_5 = arith.constant 0 : index
    %5 = vector.load %arg3[%c0_4, %c0_5] : memref<128x128xbf16, #tpu.memory_space<vmem>>, vector<128x128xbf16>
    %cst = arith.constant dense<0.000000e+00> : vector<128x128xf32>
    %6 = tpu.matmul %4, %5, %cst {dimension_numbers = #tpu.dot_dimension_numbers<[1], [0], [0], [1], [0, 0, 1, 1], [], []>} : vector<128x128xbf16>, vector<128x128xbf16>, vector<128x128xf32> -> vector<128x128xf32>
    %7 = arith.addf %3, %6 : vector<128x128xf32>
    %c0_6 = arith.constant 0 : index
    %c0_7 = arith.constant 0 : index
    %8 = vector.load %arg7[%c0_6, %c0_7] : memref<128x128xf32, #tpu.memory_space<vmem>>, vector<128x128xf32>
    tpu.vector_store %arg7[%c0_6, %c0_7], %7 {strides = array<i32>} : memref<128x128xf32, #tpu.memory_space<vmem>>, vector<128x128xf32>,
    %c0_i32_8 = arith.constant 0 : i32
    %9 = arith.cmpi eq, %arg1, %c0_i32_8 : i32
    %10 = arith.extui %9 : i1 to i32
    %c0_i32_9 = arith.constant 0 : i32
    %11 = arith.cmpi ne, %10, %c0_i32_9 : i32
    scf.if %11 {
      %c0_10 = arith.constant 0 : index
      %c0_11 = arith.constant 0 : index
      %12 = vector.load %arg7[%c0_10, %c0_11] : memref<128x128xf32, #tpu.memory_space<vmem>>, vector<128x128xf32>
      %c0_12 = arith.constant 0 : index
      %c0_13 = arith.constant 0 : index
      %13 = vector.load %arg4[%c0_12, %c0_13] : memref<1x128xf32, #tpu.memory_space<vmem>>, vector<1x128xf32>
      %14 = vector.broadcast %13 : vector<1x128xf32> to vector<128x128xf32>
      %15 = arith.addf %12, %14 : vector<128x128xf32>
      %c0_14 = arith.constant 0 : index
      %c0_15 = arith.constant 0 : index
      %16 = vector.load %arg5[%c0_14, %c0_15] : memref<128x128xf32, #tpu.memory_space<vmem>>, vector<128x128xf32>
      tpu.vector_store %arg5[%c0_14, %c0_15], %15 {strides = array<i32>} : memref<128x128xf32, #tpu.memory_space<vmem>>, vector<128x128xf32>,
      %17 = tpu.iota {dimensions = array<i32: 1>} : vector<128x128xi32>
      %c4_i32 = arith.constant 4 : i32
      %18 = vector.broadcast %c4_i32 : i32 to vector<128x128xi32>
      %19 = arith.cmpi slt, %17, %18 : vector<128x128xi32>
      %cst_16 = arith.constant 0xFF800000 : f32
      %20 = vector.broadcast %cst_16 : f32 to vector<128x128xf32>
      %21 = arith.select %19, %15, %20 : vector<128x128xi1>, vector<128x128xf32>
      %cst_17 = arith.constant dense<0xFF800000> : vector<128xf32>
      %22 = vector.multi_reduction <maximumf>, %21, %cst_17 [1] : vector<128x128xf32> to vector<128xf32>
      %23 = vector.shape_cast %22 : vector<128xf32> to vector<128x1xf32>
      %24 = vector.broadcast %23 : vector<128x1xf32> to vector<128x128xf32>
      %25 = arith.subf %15, %24 : vector<128x128xf32>
      %26 = math.exp %25 : vector<128x128xf32>
      %cst_18 = arith.constant 0.000000e+00 : f32
      %27 = vector.broadcast %cst_18 : f32 to vector<128x128xf32>
      %28 = arith.select %19, %26, %27 : vector<128x128xi1>, vector<128x128xf32>
      %cst_19 = arith.constant dense<0.000000e+00> : vector<128xf32>
      %29 = vector.multi_reduction <add>, %28, %cst_19 [1] : vector<128x128xf32> to vector<128xf32>
      %30 = vector.shape_cast %29 : vector<128xf32> to vector<128x1xf32>
      %31 = math.log %30 : vector<128x1xf32>
      %32 = vector.broadcast %31 : vector<128x1xf32> to vector<128x128xf32>
      %33 = arith.subf %25, %32 : vector<128x128xf32>
      %c0_20 = arith.constant 0 : index
      %c0_21 = arith.constant 0 : index
      %34 = vector.load %arg6[%c0_20, %c0_21] : memref<128x128xf32, #tpu.memory_space<vmem>>, vector<128x128xf32>
      tpu.vector_store %arg6[%c0_20, %c0_21], %33 {strides = array<i32>} : memref<128x128xf32, #tpu.memory_space<vmem>>, vector<128x128xf32>,
    } else {
    }
    return
  }
  func.func @transform_0(%arg0: i32, %arg1: i32) -> (i32, i32) {
    %c0_i32 = arith.constant 0 : i32
    return %arg0, %arg1 : i32, i32
  }
  func.func @transform_1(%arg0: i32, %arg1: i32) -> (i32, i32) {
    %c0_i32 = arith.constant 0 : i32
    %c0_i32_0 = arith.constant 0 : i32
    return %arg1, %c0_i32 : i32, i32
  }
  func.func @transform_2(%arg0: i32, %arg1: i32) -> (i32, i32) {
    %c0_i32 = arith.constant 0 : i32
    %c0_i32_0 = arith.constant 0 : i32
    %c0_i32_1 = arith.constant 0 : i32
    return %c0_i32, %c0_i32_0 : i32, i32
  }
  func.func @transform_3(%arg0: i32, %arg1: i32) -> (i32, i32) {
    %c0_i32 = arith.constant 0 : i32
    %c0_i32_0 = arith.constant 0 : i32
    return %arg0, %c0_i32 : i32, i32
  }
  func.func @transform_4(%arg0: i32, %arg1: i32) -> (i32, i32) {
    %c0_i32 = arith.constant 0 : i32
    %c0_i32_0 = arith.constant 0 : i32
    return %arg0, %c0_i32 : i32, i32
  }
}

</mosaic_0001>

<llo_original>
// kernel: _gcn_forward_impl.3
$region0: #{_gcn_forward_impl.3}
  #allocation0 [shape = 'u32[]', space=smem, size = 0x4, offset = 0x4, fixed_abs, tag = 'smem constant byte address 0x4 - core index']
  #allocation1 [shape = 'u32[72,128]{1,0:T(1,128)}', space=vmem, size = 0x9000, scoped, tag = 'internal scratch']
  %s0 = inlined_call_operand.vmem [shape: bf16[128,128], index: 0, kind: input, shape index: {}]
  %s1 = inlined_call_operand.vmem [shape: bf16[128,128], index: 1, kind: input, shape index: {}]
  %s2 = inlined_call_operand.vmem [shape: bf16[128,128], index: 2, kind: output, shape index: {}]
  %s3 = sld [smem:[#allocation0]]
  $region18: #{_gcn_forward_impl.3} parent=0
    _
  %s5 = ssub.s32 1, %s3
  %s6 = scalar_select 0, %s5, %s3
  // Predicated region
  $region2: #{_gcn_forward_impl.3} parent=0 // pred_check
    _
  $region3: #{_gcn_forward_impl.3} parent=0 // pred_check_branch
    %8 = sbr.rel (0) target = $region5
  $region4: #{_gcn_forward_impl.3} parent=0 // pred_region
    _
  $region5: #{_gcn_forward_impl.3} parent=0 // pred_fallthru
    _
  // Predicated region
  $region6: #{_gcn_forward_impl.3} parent=0 // pred_check
    _
  $region7: #{_gcn_forward_impl.3} parent=0 // pred_check_branch
    %10 = sbr.rel (0) target = $region9
  $region8: #{_gcn_forward_impl.3} parent=0 // pred_region
    _
  $region9: #{_gcn_forward_impl.3} parent=0 // pred_fallthru
    _
  %v11 = vld [vmem:[%s0] sm:$0xf]
  %v12 = vld [vmem:[%s0 + $0x4] sm:$0xf]
  %v13 = vld [vmem:[%s0 + $0x8] sm:$0xf]
  %v14 = vld [vmem:[%s0 + $0xc] sm:$0xf]
  %v15 = vld [vmem:[%s0 + $0x10] sm:$0xf]
  %v16 = vld [vmem:[%s0 + $0x14] sm:$0xf]
  %v17 = vld [vmem:[%s0 + $0x18] sm:$0xf]
  %v18 = vld [vmem:[%s0 + $0x1c] sm:$0xf]
  %v19 = vld [vmem:[%s0 + $0x20] sm:$0xf]
  %v20 = vld [vmem:[%s0 + $0x24] sm:$0xf]
  %v21 = vld [vmem:[%s0 + $0x28] sm:$0xf]
  %v22 = vld [vmem:[%s0 + $0x2c] sm:$0xf]
  %v23 = vld [vmem:[%s0 + $0x30] sm:$0xf]
  %v24 = vld [vmem:[%s0 + $0x34] sm:$0xf]
  %v25 = vld [vmem:[%s0 + $0x38] sm:$0xf]
  %v26 = vld [vmem:[%s0 + $0x3c] sm:$0xf]
  %v27 = vld [vmem:[%s1] sm:$0xf]
  %v28 = vld [vmem:[%s1 + $0x4] sm:$0xf]
  %v29 = vld [vmem:[%s1 + $0x8] sm:$0xf]
  %v30 = vld [vmem:[%s1 + $0xc] sm:$0xf]
  %v31 = vld [vmem:[%s1 + $0x10] sm:$0xf]
  %v32 = vld [vmem:[%s1 + $0x14] sm:$0xf]
  %v33 = vld [vmem:[%s1 + $0x18] sm:$0xf]
  %v34 = vld [vmem:[%s1 + $0x1c] sm:$0xf]
  %v35 = vld [vmem:[%s1 + $0x20] sm:$0xf]
  %v36 = vld [vmem:[%s1 + $0x24] sm:$0xf]
  %v37 = vld [vmem:[%s1 + $0x28] sm:$0xf]
  %v38 = vld [vmem:[%s1 + $0x2c] sm:$0xf]
  %v39 = vld [vmem:[%s1 + $0x30] sm:$0xf]
  %v40 = vld [vmem:[%s1 + $0x34] sm:$0xf]
  %v41 = vld [vmem:[%s1 + $0x38] sm:$0xf]
  %v42 = vld [vmem:[%s1 + $0x3c] sm:$0xf]
  %v59 = vunpack.c.l.b16 %v11
  %v60 = vunpack.c.l.b16 %v12
  %v61 = vunpack.c.l.b16 %v13
  %v62 = vunpack.c.l.b16 %v14
  %v63 = vunpack.c.l.b16 %v15
  %v64 = vunpack.c.l.b16 %v16
  %v65 = vunpack.c.l.b16 %v17
  %v66 = vunpack.c.l.b16 %v18
  %v67 = vunpack.c.l.b16 %v19
  %v68 = vunpack.c.l.b16 %v20
  %v69 = vunpack.c.l.b16 %v21
  %v70 = vunpack.c.l.b16 %v22
  %v71 = vunpack.c.l.b16 %v23
  %v72 = vunpack.c.l.b16 %v24
  %v73 = vunpack.c.l.b16 %v25
  %v74 = vunpack.c.l.b16 %v26
  %v75 = vpack.c.b16 %v60, %v59
  %v76 = vpack.c.b16 %v62, %v61
  %v77 = vpack.c.b16 %v64, %v63
  %v78 = vpack.c.b16 %v66, %v65
  %v79 = vpack.c.b16 %v68, %v67
  %v80 = vpack.c.b16 %v70, %v69
  %v81 = vpack.c.b16 %v72, %v71
  %v82 = vpack.c.b16 %v74, %v73
  %v107 = vunpack.c.l.b16 %v27
  %v108 = vunpack.c.l.b16 %v28
  %v109 = vunpack.c.l.b16 %v29
  %v110 = vunpack.c.l.b16 %v30
  %v111 = vunpack.c.l.b16 %v31
  %v112 = vunpack.c.l.b16 %v32
  %v113 = vunpack.c.l.b16 %v33
  %v114 = vunpack.c.l.b16 %v34
  %v115 = vunpack.c.l.b16 %v35
  %v116 = vunpack.c.l.b16 %v36
  %v117 = vunpack.c.l.b16 %v37
  %v118 = vunpack.c.l.b16 %v38
  %v119 = vunpack.c.l.b16 %v39
  %v120 = vunpack.c.l.b16 %v40
  %v121 = vunpack.c.l.b16 %v41
  %v122 = vunpack.c.l.b16 %v42
  %v123 = vpack.c.b16 %v108, %v107
  %v124 = vpack.c.b16 %v110, %v109
  %v125 = vpack.c.b16 %v112, %v111
  %v126 = vpack.c.b16 %v114, %v113
  %v127 = vpack.c.b16 %v116, %v115
  %v128 = vpack.c.b16 %v118, %v117
  %v129 = vpack.c.b16 %v120, %v119
  %v130 = vpack.c.b16 %v122, %v121
  %139 = vmatpush.bf16.msra.mxu0 %v130
  %140 = vmatpush.bf16.msra.mxu0 %v129
  %141 = vmatpush.bf16.msra.mxu0 %v128
  %142 = vmatpush.bf16.msra.mxu0 %v127
  %143 = vmatpush.bf16.msra.mxu0 %v126
  %144 = vmatpush.bf16.msra.mxu0 %v125
  %145 = vmatpush.bf16.msra.mxu0 %v124
  %146 = vmatpush.bf16.msra.mxu0 %v123
  %147 = vmatmul.bf16.gmra.mxu0 %v75
  %v148 = vpop.f32.mrf.mxu0
  %v149 = vadd.f32 0.0, %v148
  %v150 = vpop.f32.mrf.mxu0
  %v151 = vadd.f32 0.0, %v150
  %152 = vmatmul.bf16.gmra.mxu0 %v76
  %v153 = vpop.f32.mrf.mxu0
  %v154 = vadd.f32 0.0, %v153
  %v155 = vpop.f32.mrf.mxu0
  %v156 = vadd.f32 0.0, %v155
  %157 = vmatmul.bf16.gmra.mxu0 %v77
  %v158 = vpop.f32.mrf.mxu0
  %v159 = vadd.f32 0.0, %v158
  %v160 = vpop.f32.mrf.mxu0
  %v161 = vadd.f32 0.0, %v160
  %162 = vmatmul.bf16.gmra.mxu0 %v78
  %v163 = vpop.f32.mrf.mxu0
  %v164 = vadd.f32 0.0, %v163
  %v165 = vpop.f32.mrf.mxu0
  %v166 = vadd.f32 0.0, %v165
  %167 = vmatmul.bf16.gmra.mxu0 %v79
  %v168 = vpop.f32.mrf.mxu0
  %v169 = vadd.f32 0.0, %v168
  %v170 = vpop.f32.mrf.mxu0
  %v171 = vadd.f32 0.0, %v170
  %172 = vmatmul.bf16.gmra.mxu0 %v80
  %v173 = vpop.f32.mrf.mxu0
  %v174 = vadd.f32 0.0, %v173
  %v175 = vpop.f32.mrf.mxu0
  %v176 = vadd.f32 0.0, %v175
  %177 = vmatmul.bf16.gmra.mxu0 %v81
  %v178 = vpop.f32.mrf.mxu0
  %v179 = vadd.f32 0.0, %v178
  %v180 = vpop.f32.mrf.mxu0
  %v181 = vadd.f32 0.0, %v180
  %182 = vmatmul.bf16.gmra.mxu0 %v82
  %v183 = vpop.f32.mrf.mxu0
  %v184 = vadd.f32 0.0, %v183
  %v185 = vpop.f32.mrf.mxu0
  %v186 = vadd.f32 0.0, %v185
  %187 = vdwg.mxu0
  %v188 = vpack.c.bf16 %v149, %v149
  %v189 = vpack.c.bf16 %v151, %v151
  %v190 = vpack.c.bf16 %v154, %v154
  %v191 = vpack.c.bf16 %v156, %v156
  %v192 = vpack.c.bf16 %v159, %v159
  %v193 = vpack.c.bf16 %v161, %v161
  %v194 = vpack.c.bf16 %v164, %v164
  %v195 = vpack.c.bf16 %v166, %v166
  %v196 = vpack.c.bf16 %v169, %v169
  %v197 = vpack.c.bf16 %v171, %v171
  %v198 = vpack.c.bf16 %v174, %v174
  %v199 = vpack.c.bf16 %v176, %v176
  %v200 = vpack.c.bf16 %v179, %v179
  %v201 = vpack.c.bf16 %v181, %v181
  %v202 = vpack.c.bf16 %v184, %v184
  %v203 = vpack.c.bf16 %v186, %v186
  %204 = vst [vmem:[%s2] sm:$0xf] %v188
  %205 = vst [vmem:[%s2 + $0x4] sm:$0xf] %v189
  %206 = vst [vmem:[%s2 + $0x8] sm:$0xf] %v190
  %207 = vst [vmem:[%s2 + $0xc] sm:$0xf] %v191
  %208 = vst [vmem:[%s2 + $0x10] sm:$0xf] %v192
  %209 = vst [vmem:[%s2 + $0x14] sm:$0xf] %v193
  %210 = vst [vmem:[%s2 + $0x18] sm:$0xf] %v194
  %211 = vst [vmem:[%s2 + $0x1c] sm:$0xf] %v195
  %212 = vst [vmem:[%s2 + $0x20] sm:$0xf] %v196
  %213 = vst [vmem:[%s2 + $0x24] sm:$0xf] %v197
  %214 = vst [vmem:[%s2 + $0x28] sm:$0xf] %v198
  %215 = vst [vmem:[%s2 + $0x2c] sm:$0xf] %v199
  %216 = vst [vmem:[%s2 + $0x30] sm:$0xf] %v200
  %217 = vst [vmem:[%s2 + $0x34] sm:$0xf] %v201
  %218 = vst [vmem:[%s2 + $0x38] sm:$0xf] %v202
  %219 = vst [vmem:[%s2 + $0x3c] sm:$0xf] %v203
  // Predicated region
  $region10: #{_gcn_forward_impl.3} parent=0 // pred_check
    _
  $region11: #{_gcn_forward_impl.3} parent=0 // pred_check_branch
    %221 = sbr.rel (0) target = $region13
  $region12: #{_gcn_forward_impl.3} parent=0 // pred_region
    _
  $region13: #{_gcn_forward_impl.3} parent=0 // pred_fallthru
    _
  // Predicated region
  $region14: #{_gcn_forward_impl.3} parent=0 // pred_check
    _
  $region15: #{_gcn_forward_impl.3} parent=0 // pred_check_branch
    %223 = sbr.rel (0) target = $region17
  $region16: #{_gcn_forward_impl.3} parent=0 // pred_region
    _
  $region17: #{_gcn_forward_impl.3} parent=0 // pred_fallthru
    _

// kernel: _gcn_forward_impl.4
$region0: #{_gcn_forward_impl.4}
  #allocation0 [shape = 'u32[]', space=smem, size = 0x4, offset = 0x4, fixed_abs, tag = 'smem constant byte address 0x4 - core index']
  #allocation1 [shape = 'u32[72,128]{1,0:T(1,128)}', space=vmem, size = 0x9000, scoped, tag = 'internal scratch']
  #allocation2 [shape = 'f32[128,128]{1,0:T(8,128)}', space=vmem, size = 0x10000, scoped, tag = 'scratch operand']
  %s0 = inlined_call_operand.vmem [shape: bf16[128,128], index: 0, kind: input, shape index: {}]
  %s1 = inlined_call_operand.vmem [shape: bf16[128,128], index: 1, kind: input, shape index: {}]
  %s2 = inlined_call_operand.vmem [shape: f32[1,128], index: 2, kind: input, shape index: {}]
  %s3 = inlined_call_operand.vmem [shape: bf16[128,128], index: 3, kind: input, shape index: {}]
  %s4 = inlined_call_operand.vmem [shape: bf16[128,128], index: 4, kind: output, shape index: {}]
  %s5 = sld [smem:[#allocation0]]
  $region34: #{_gcn_forward_impl.4} parent=0
    _
  %s7 = ssub.s32 1, %s5
  %s8 = scalar_select 0, %s7, %s5
  // Predicated region
  $region2: #{_gcn_forward_impl.4} parent=0 // pred_check
    _
  $region3: #{_gcn_forward_impl.4} parent=0 // pred_check_branch
    %10 = sbr.rel (0) target = $region5
  $region4: #{_gcn_forward_impl.4} parent=0 // pred_region
    _
  $region5: #{_gcn_forward_impl.4} parent=0 // pred_fallthru
    _
  // Predicated region
  $region6: #{_gcn_forward_impl.4} parent=0 // pred_check
    _
  $region7: #{_gcn_forward_impl.4} parent=0 // pred_check_branch
    %12 = sbr.rel (0) target = $region9
  $region8: #{_gcn_forward_impl.4} parent=0 // pred_region
    _
  $region9: #{_gcn_forward_impl.4} parent=0 // pred_fallthru
    _
  // Predicated region
  $region10: #{_gcn_forward_impl.4} parent=0 // pred_check
    _
  $region11: #{_gcn_forward_impl.4} parent=0 // pred_check_branch
    %14 = sbr.rel (0) target = $region13
  $region12: #{_gcn_forward_impl.4} parent=0 // pred_region
    _
  $region13: #{_gcn_forward_impl.4} parent=0 // pred_fallthru
    _
  // Predicated region
  $region14: #{_gcn_forward_impl.4} parent=0 // pred_check
    _
  $region15: #{_gcn_forward_impl.4} parent=0 // pred_check_branch
    %16 = sbr.rel (0) target = $region17
  $region16: #{_gcn_forward_impl.4} parent=0 // pred_region
    _
  $region17: #{_gcn_forward_impl.4} parent=0 // pred_fallthru
    _
  %p17 = scmp.eq.s32.totalorder 0, 0
  // Predicated region
  $region18: #{_gcn_forward_impl.4} parent=0 // pred_check
    %p18 = pneg %p17
  $region19: #{_gcn_forward_impl.4} parent=0 // pred_check_branch
    %20 = sbr.rel (%p18) target = $region21
  $region20: #{_gcn_forward_impl.4} parent=0 // pred_region
    %21 = vst [vmem:[#allocation2] sm:$0xff] 0.0
    %22 = vst [vmem:[#allocation2 + $0x8] sm:$0xff] 0.0
    %23 = vst [vmem:[#allocation2 + $0x10] sm:$0xff] 0.0
    %24 = vst [vmem:[#allocation2 + $0x18] sm:$0xff] 0.0
    %25 = vst [vmem:[#allocation2 + $0x20] sm:$0xff] 0.0
    %26 = vst [vmem:[#allocation2 + $0x28] sm:$0xff] 0.0
    %27 = vst [vmem:[#allocation2 + $0x30] sm:$0xff] 0.0
    %28 = vst [vmem:[#allocation2 + $0x38] sm:$0xff] 0.0
    %29 = vst [vmem:[#allocation2 + $0x40] sm:$0xff] 0.0
    %30 = vst [vmem:[#allocation2 + $0x48] sm:$0xff] 0.0
    %31 = vst [vmem:[#allocation2 + $0x50] sm:$0xff] 0.0
    %32 = vst [vmem:[#allocation2 + $0x58] sm:$0xff] 0.0
    %33 = vst [vmem:[#allocation2 + $0x60] sm:$0xff] 0.0
    %34 = vst [vmem:[#allocation2 + $0x68] sm:$0xff] 0.0
    %35 = vst [vmem:[#allocation2 + $0x70] sm:$0xff] 0.0
    %36 = vst [vmem:[#allocation2 + $0x78] sm:$0xff] 0.0
  $region21: #{_gcn_forward_impl.4} parent=0 // pred_fallthru
    _
  %v37 = vld [vmem:[#allocation2] sm:$0xff]
  %v38 = vld [vmem:[#allocation2 + $0x8] sm:$0xff]
  %v39 = vld [vmem:[#allocation2 + $0x10] sm:$0xff]
  %v40 = vld [vmem:[#allocation2 + $0x18] sm:$0xff]
  %v41 = vld [vmem:[#allocation2 + $0x20] sm:$0xff]
  %v42 = vld [vmem:[#allocation2 + $0x28] sm:$0xff]
  %v43 = vld [vmem:[#allocation2 + $0x30] sm:$0xff]
  %v44 = vld [vmem:[#allocation2 + $0x38] sm:$0xff]
  %v45 = vld [vmem:[#allocation2 + $0x40] sm:$0xff]
  %v46 = vld [vmem:[#allocation2 + $0x48] sm:$0xff]
  %v47 = vld [vmem:[#allocation2 + $0x50] sm:$0xff]
  %v48 = vld [vmem:[#allocation2 + $0x58] sm:$0xff]
  %v49 = vld [vmem:[#allocation2 + $0x60] sm:$0xff]
  %v50 = vld [vmem:[#allocation2 + $0x68] sm:$0xff]
  %v51 = vld [vmem:[#allocation2 + $0x70] sm:$0xff]
  %v52 = vld [vmem:[#allocation2 + $0x78] sm:$0xff]
  %v53 = vld [vmem:[%s0] sm:$0xf]
  %v54 = vld [vmem:[%s0 + $0x4] sm:$0xf]
  %v55 = vld [vmem:[%s0 + $0x8] sm:$0xf]
  %v56 = vld [vmem:[%s0 + $0xc] sm:$0xf]
  %v57 = vld [vmem:[%s0 + $0x10] sm:$0xf]
  %v58 = vld [vmem:[%s0 + $0x14] sm:$0xf]
  %v59 = vld [vmem:[%s0 + $0x18] sm:$0xf]
  %v60 = vld [vmem:[%s0 + $0x1c] sm:$0xf]
  %v61 = vld [vmem:[%s0 + $0x20] sm:$0xf]
  %v62 = vld [vmem:[%s0 + $0x24] sm:$0xf]
  %v63 = vld [vmem:[%s0 + $0x28] sm:$0xf]
  %v64 = vld [vmem:[%s0 + $0x2c] sm:$0xf]
  %v65 = vld [vmem:[%s0 + $0x30] sm:$0xf]
  %v66 = vld [vmem:[%s0 + $0x34] sm:$0xf]
  %v67 = vld [vmem:[%s0 + $0x38] sm:$0xf]
  %v68 = vld [vmem:[%s0 + $0x3c] sm:$0xf]
  %v69 = vld [vmem:[%s1] sm:$0xf]
  %v70 = vld [vmem:[%s1 + $0x4] sm:$0xf]
  %v71 = vld [vmem:[%s1 + $0x8] sm:$0xf]
  %v72 = vld [vmem:[%s1 + $0xc] sm:$0xf]
  %v73 = vld [vmem:[%s1 + $0x10] sm:$0xf]
  %v74 = vld [vmem:[%s1 + $0x14] sm:$0xf]
  %v75 = vld [vmem:[%s1 + $0x18] sm:$0xf]
  %v76 = vld [vmem:[%s1 + $0x1c] sm:$0xf]
  %v77 = vld [vmem:[%s1 + $0x20] sm:$0xf]
  %v78 = vld [vmem:[%s1 + $0x24] sm:$0xf]
  %v79 = vld [vmem:[%s1 + $0x28] sm:$0xf]
  %v80 = vld [vmem:[%s1 + $0x2c] sm:$0xf]
  %v81 = vld [vmem:[%s1 + $0x30] sm:$0xf]
  %v82 = vld [vmem:[%s1 + $0x34] sm:$0xf]
  %v83 = vld [vmem:[%s1 + $0x38] sm:$0xf]
  %v84 = vld [vmem:[%s1 + $0x3c] sm:$0xf]
  %v101 = vunpack.c.l.b16 %v53
  %v102 = vunpack.c.l.b16 %v54
  %v103 = vunpack.c.l.b16 %v55
  %v104 = vunpack.c.l.b16 %v56
  %v105 = vunpack.c.l.b16 %v57
  %v106 = vunpack.c.l.b16 %v58
  %v107 = vunpack.c.l.b16 %v59
  %v108 = vunpack.c.l.b16 %v60
  %v109 = vunpack.c.l.b16 %v61
  %v110 = vunpack.c.l.b16 %v62
  %v111 = vunpack.c.l.b16 %v63
  %v112 = vunpack.c.l.b16 %v64
  %v113 = vunpack.c.l.b16 %v65
  %v114 = vunpack.c.l.b16 %v66
  %v115 = vunpack.c.l.b16 %v67
  %v116 = vunpack.c.l.b16 %v68
  %v117 = vpack.c.b16 %v102, %v101
  %v118 = vpack.c.b16 %v104, %v103
  %v119 = vpack.c.b16 %v106, %v105
  %v120 = vpack.c.b16 %v108, %v107
  %v121 = vpack.c.b16 %v110, %v109
  %v122 = vpack.c.b16 %v112, %v111
  %v123 = vpack.c.b16 %v114, %v113
  %v124 = vpack.c.b16 %v116, %v115
  %v149 = vunpack.c.l.b16 %v69
  %v150 = vunpack.c.l.b16 %v70
  %v151 = vunpack.c.l.b16 %v71
  %v152 = vunpack.c.l.b16 %v72
  %v153 = vunpack.c.l.b16 %v73
  %v154 = vunpack.c.l.b16 %v74
  %v155 = vunpack.c.l.b16 %v75
  %v156 = vunpack.c.l.b16 %v76
  %v157 = vunpack.c.l.b16 %v77
  %v158 = vunpack.c.l.b16 %v78
  %v159 = vunpack.c.l.b16 %v79
  %v160 = vunpack.c.l.b16 %v80
  %v161 = vunpack.c.l.b16 %v81
  %v162 = vunpack.c.l.b16 %v82
  %v163 = vunpack.c.l.b16 %v83
  %v164 = vunpack.c.l.b16 %v84
  %v165 = vpack.c.b16 %v150, %v149
  %v166 = vpack.c.b16 %v152, %v151
  %v167 = vpack.c.b16 %v154, %v153
  %v168 = vpack.c.b16 %v156, %v155
  %v169 = vpack.c.b16 %v158, %v157
  %v170 = vpack.c.b16 %v160, %v159
  %v171 = vpack.c.b16 %v162, %v161
  %v172 = vpack.c.b16 %v164, %v163
  %181 = vmatpush.bf16.msra.mxu0 %v172
  %182 = vmatpush.bf16.msra.mxu0 %v171
  %183 = vmatpush.bf16.msra.mxu0 %v170
  %184 = vmatpush.bf16.msra.mxu0 %v169
  %185 = vmatpush.bf16.msra.mxu0 %v168
  %186 = vmatpush.bf16.msra.mxu0 %v167
  %187 = vmatpush.bf16.msra.mxu0 %v166
  %188 = vmatpush.bf16.msra.mxu0 %v165
  %189 = vmatmul.bf16.gmra.mxu0 %v117
  %v190 = vpop.f32.mrf.mxu0
  %v191 = vadd.f32 0.0, %v190
  %v192 = vpop.f32.mrf.mxu0
  %v193 = vadd.f32 0.0, %v192
  %194 = vmatmul.bf16.gmra.mxu0 %v118
  %v195 = vpop.f32.mrf.mxu0
  %v196 = vadd.f32 0.0, %v195
  %v197 = vpop.f32.mrf.mxu0
  %v198 = vadd.f32 0.0, %v197
  %199 = vmatmul.bf16.gmra.mxu0 %v119
  %v200 = vpop.f32.mrf.mxu0
  %v201 = vadd.f32 0.0, %v200
  %v202 = vpop.f32.mrf.mxu0
  %v203 = vadd.f32 0.0, %v202
  %204 = vmatmul.bf16.gmra.mxu0 %v120
  %v205 = vpop.f32.mrf.mxu0
  %v206 = vadd.f32 0.0, %v205
  %v207 = vpop.f32.mrf.mxu0
  %v208 = vadd.f32 0.0, %v207
  %209 = vmatmul.bf16.gmra.mxu0 %v121
  %v210 = vpop.f32.mrf.mxu0
  %v211 = vadd.f32 0.0, %v210
  %v212 = vpop.f32.mrf.mxu0
  %v213 = vadd.f32 0.0, %v212
  %214 = vmatmul.bf16.gmra.mxu0 %v122
  %v215 = vpop.f32.mrf.mxu0
  %v216 = vadd.f32 0.0, %v215
  %v217 = vpop.f32.mrf.mxu0
  %v218 = vadd.f32 0.0, %v217
  %219 = vmatmul.bf16.gmra.mxu0 %v123
  %v220 = vpop.f32.mrf.mxu0
  %v221 = vadd.f32 0.0, %v220
  %v222 = vpop.f32.mrf.mxu0
  %v223 = vadd.f32 0.0, %v222
  %224 = vmatmul.bf16.gmra.mxu0 %v124
  %v225 = vpop.f32.mrf.mxu0
  %v226 = vadd.f32 0.0, %v225
  %v227 = vpop.f32.mrf.mxu0
  %v228 = vadd.f32 0.0, %v227
  %229 = vdwg.mxu0
  %v230 = vadd.f32 %v37, %v191
  %v231 = vadd.f32 %v38, %v193
  %v232 = vadd.f32 %v39, %v196
  %v233 = vadd.f32 %v40, %v198
  %v234 = vadd.f32 %v41, %v201
  %v235 = vadd.f32 %v42, %v203
  %v236 = vadd.f32 %v43, %v206
  %v237 = vadd.f32 %v44, %v208
  %v238 = vadd.f32 %v45, %v211
  %v239 = vadd.f32 %v46, %v213
  %v240 = vadd.f32 %v47, %v216
  %v241 = vadd.f32 %v48, %v218
  %v242 = vadd.f32 %v49, %v221
  %v243 = vadd.f32 %v50, %v223
  %v244 = vadd.f32 %v51, %v226
  %v245 = vadd.f32 %v52, %v228
  %246 = vst [vmem:[#allocation2] sm:$0xff] %v230
  %247 = vst [vmem:[#allocation2 + $0x8] sm:$0xff] %v231
  %248 = vst [vmem:[#allocation2 + $0x10] sm:$0xff] %v232
  %249 = vst [vmem:[#allocation2 + $0x18] sm:$0xff] %v233
  %250 = vst [vmem:[#allocation2 + $0x20] sm:$0xff] %v234
  %251 = vst [vmem:[#allocation2 + $0x28] sm:$0xff] %v235
  %252 = vst [vmem:[#allocation2 + $0x30] sm:$0xff] %v236
  %253 = vst [vmem:[#allocation2 + $0x38] sm:$0xff] %v237
  %254 = vst [vmem:[#allocation2 + $0x40] sm:$0xff] %v238
  %255 = vst [vmem:[#allocation2 + $0x48] sm:$0xff] %v239
  %256 = vst [vmem:[#allocation2 + $0x50] sm:$0xff] %v240
  %257 = vst [vmem:[#allocation2 + $0x58] sm:$0xff] %v241
  %258 = vst [vmem:[#allocation2 + $0x60] sm:$0xff] %v242
  %259 = vst [vmem:[#allocation2 + $0x68] sm:$0xff] %v243
  %260 = vst [vmem:[#allocation2 + $0x70] sm:$0xff] %v244
  %261 = vst [vmem:[#allocation2 + $0x78] sm:$0xff] %v245
  // Predicated region
  $region22: #{_gcn_forward_impl.4} parent=0 // pred_check
    %p262 = pneg %p17
  $region23: #{_gcn_forward_impl.4} parent=0 // pred_check_branch
    %264 = sbr.rel (%p262) target = $region25
  $region24: #{_gcn_forward_impl.4} parent=0 // pred_region
    %v265 = vld [vmem:[#allocation2] sm:$0xff]
    %v266 = vld [vmem:[#allocation2 + $0x8] sm:$0xff]
    %v267 = vld [vmem:[#allocation2 + $0x10] sm:$0xff]
    %v268 = vld [vmem:[#allocation2 + $0x18] sm:$0xff]
    %v269 = vld [vmem:[#allocation2 + $0x20] sm:$0xff]
    %v270 = vld [vmem:[#allocation2 + $0x28] sm:$0xff]
    %v271 = vld [vmem:[#allocation2 + $0x30] sm:$0xff]
    %v272 = vld [vmem:[#allocation2 + $0x38] sm:$0xff]
    %v273 = vld [vmem:[#allocation2 + $0x40] sm:$0xff]
    %v274 = vld [vmem:[#allocation2 + $0x48] sm:$0xff]
    %v275 = vld [vmem:[#allocation2 + $0x50] sm:$0xff]
    %v276 = vld [vmem:[#allocation2 + $0x58] sm:$0xff]
    %v277 = vld [vmem:[#allocation2 + $0x60] sm:$0xff]
    %v278 = vld [vmem:[#allocation2 + $0x68] sm:$0xff]
    %v279 = vld [vmem:[#allocation2 + $0x70] sm:$0xff]
    %v280 = vld [vmem:[#allocation2 + $0x78] sm:$0xff]
    %v281 = vld [vmem:[%s2] sm:$0x1]
    %v283 = vperm.slane %v281, 0
    %v285 = vadd.f32 %v265, %v283
    %v286 = vadd.f32 %v266, %v283
    %v287 = vadd.f32 %v267, %v283
    %v288 = vadd.f32 %v268, %v283
    %v289 = vadd.f32 %v269, %v283
    %v290 = vadd.f32 %v270, %v283
    %v291 = vadd.f32 %v271, %v283
    %v292 = vadd.f32 %v272, %v283
    %v293 = vadd.f32 %v273, %v283
    %v294 = vadd.f32 %v274, %v283
    %v295 = vadd.f32 %v275, %v283
    %v296 = vadd.f32 %v276, %v283
    %v297 = vadd.f32 %v277, %v283
    %v298 = vadd.f32 %v278, %v283
    %v299 = vadd.f32 %v279, %v283
    %v300 = vadd.f32 %v280, %v283
    %v301 = vmax.f32 %v285, 0.0
    %v302 = vmax.f32 %v286, 0.0
    %v303 = vmax.f32 %v287, 0.0
    %v304 = vmax.f32 %v288, 0.0
    %v305 = vmax.f32 %v289, 0.0
    %v306 = vmax.f32 %v290, 0.0
    %v307 = vmax.f32 %v291, 0.0
    %v308 = vmax.f32 %v292, 0.0
    %v309 = vmax.f32 %v293, 0.0
    %v310 = vmax.f32 %v294, 0.0
    %v311 = vmax.f32 %v295, 0.0
    %v312 = vmax.f32 %v296, 0.0
    %v313 = vmax.f32 %v297, 0.0
    %v314 = vmax.f32 %v298, 0.0
    %v315 = vmax.f32 %v299, 0.0
    %v316 = vmax.f32 %v300, 0.0
    %v317 = vpack.c.bf16 %v302, %v301
    %v318 = vpack.c.bf16 %v304, %v303
    %v319 = vpack.c.bf16 %v306, %v305
    %v320 = vpack.c.bf16 %v308, %v307
    %v321 = vpack.c.bf16 %v310, %v309
    %v322 = vpack.c.bf16 %v312, %v311
    %v323 = vpack.c.bf16 %v314, %v313
    %v324 = vpack.c.bf16 %v316, %v315
    %v325 = vld [vmem:[%s3] sm:$0xf]
    %v326 = vld [vmem:[%s3 + $0x4] sm:$0xf]
    %v327 = vld [vmem:[%s3 + $0x8] sm:$0xf]
    %v328 = vld [vmem:[%s3 + $0xc] sm:$0xf]
    %v329 = vld [vmem:[%s3 + $0x10] sm:$0xf]
    %v330 = vld [vmem:[%s3 + $0x14] sm:$0xf]
    %v331 = vld [vmem:[%s3 + $0x18] sm:$0xf]
    %v332 = vld [vmem:[%s3 + $0x1c] sm:$0xf]
    %v333 = vld [vmem:[%s3 + $0x20] sm:$0xf]
    %v334 = vld [vmem:[%s3 + $0x24] sm:$0xf]
    %v335 = vld [vmem:[%s3 + $0x28] sm:$0xf]
    %v336 = vld [vmem:[%s3 + $0x2c] sm:$0xf]
    %v337 = vld [vmem:[%s3 + $0x30] sm:$0xf]
    %v338 = vld [vmem:[%s3 + $0x34] sm:$0xf]
    %v339 = vld [vmem:[%s3 + $0x38] sm:$0xf]
    %v340 = vld [vmem:[%s3 + $0x3c] sm:$0xf]
    %v357 = vunpack.c.l.b16 %v325
    %v358 = vunpack.c.l.b16 %v326
    %v359 = vunpack.c.l.b16 %v327
    %v360 = vunpack.c.l.b16 %v328
    %v361 = vunpack.c.l.b16 %v329
    %v362 = vunpack.c.l.b16 %v330
    %v363 = vunpack.c.l.b16 %v331
    %v364 = vunpack.c.l.b16 %v332
    %v365 = vunpack.c.l.b16 %v333
    %v366 = vunpack.c.l.b16 %v334
    %v367 = vunpack.c.l.b16 %v335
    %v368 = vunpack.c.l.b16 %v336
    %v369 = vunpack.c.l.b16 %v337
    %v370 = vunpack.c.l.b16 %v338
    %v371 = vunpack.c.l.b16 %v339
    %v372 = vunpack.c.l.b16 %v340
    %v373 = vpack.c.b16 %v358, %v357
    %v374 = vpack.c.b16 %v360, %v359
    %v375 = vpack.c.b16 %v362, %v361
    %v376 = vpack.c.b16 %v364, %v363
    %v377 = vpack.c.b16 %v366, %v365
    %v378 = vpack.c.b16 %v368, %v367
    %v379 = vpack.c.b16 %v370, %v369
    %v380 = vpack.c.b16 %v372, %v371
    %389 = vmatpush.bf16.msra.mxu0 %v380
    %390 = vmatpush.bf16.msra.mxu0 %v379
    %391 = vmatpush.bf16.msra.mxu0 %v378
    %392 = vmatpush.bf16.msra.mxu0 %v377
    %393 = vmatpush.bf16.msra.mxu0 %v376
    %394 = vmatpush.bf16.msra.mxu0 %v375
    %395 = vmatpush.bf16.msra.mxu0 %v374
    %396 = vmatpush.bf16.msra.mxu0 %v373
    %397 = vmatmul.bf16.gmra.mxu0 %v317
    %v398 = vpop.f32.mrf.mxu0
    %v399 = vadd.f32 0.0, %v398
    %v400 = vpop.f32.mrf.mxu0
    %v401 = vadd.f32 0.0, %v400
    %402 = vmatmul.bf16.gmra.mxu0 %v318
    %v403 = vpop.f32.mrf.mxu0
    %v404 = vadd.f32 0.0, %v403
    %v405 = vpop.f32.mrf.mxu0
    %v406 = vadd.f32 0.0, %v405
    %407 = vmatmul.bf16.gmra.mxu0 %v319
    %v408 = vpop.f32.mrf.mxu0
    %v409 = vadd.f32 0.0, %v408
    %v410 = vpop.f32.mrf.mxu0
    %v411 = vadd.f32 0.0, %v410
    %412 = vmatmul.bf16.gmra.mxu0 %v320
    %v413 = vpop.f32.mrf.mxu0
    %v414 = vadd.f32 0.0, %v413
    %v415 = vpop.f32.mrf.mxu0
    %v416 = vadd.f32 0.0, %v415
    %417 = vmatmul.bf16.gmra.mxu0 %v321
    %v418 = vpop.f32.mrf.mxu0
    %v419 = vadd.f32 0.0, %v418
    %v420 = vpop.f32.mrf.mxu0
    %v421 = vadd.f32 0.0, %v420
    %422 = vmatmul.bf16.gmra.mxu0 %v322
    %v423 = vpop.f32.mrf.mxu0
    %v424 = vadd.f32 0.0, %v423
    %v425 = vpop.f32.mrf.mxu0
    %v426 = vadd.f32 0.0, %v425
    %427 = vmatmul.bf16.gmra.mxu0 %v323
    %v428 = vpop.f32.mrf.mxu0
    %v429 = vadd.f32 0.0, %v428
    %v430 = vpop.f32.mrf.mxu0
    %v431 = vadd.f32 0.0, %v430
    %432 = vmatmul.bf16.gmra.mxu0 %v324
    %v433 = vpop.f32.mrf.mxu0
    %v434 = vadd.f32 0.0, %v433
    %v435 = vpop.f32.mrf.mxu0
    %v436 = vadd.f32 0.0, %v435
    %437 = vdwg.mxu0
    %v438 = vpack.c.bf16 %v399, %v399
    %v439 = vpack.c.bf16 %v401, %v401
    %v440 = vpack.c.bf16 %v404, %v404
    %v441 = vpack.c.bf16 %v406, %v406
    %v442 = vpack.c.bf16 %v409, %v409
    %v443 = vpack.c.bf16 %v411, %v411
    %v444 = vpack.c.bf16 %v414, %v414
    %v445 = vpack.c.bf16 %v416, %v416
    %v446 = vpack.c.bf16 %v419, %v419
    %v447 = vpack.c.bf16 %v421, %v421
    %v448 = vpack.c.bf16 %v424, %v424
    %v449 = vpack.c.bf16 %v426, %v426
    %v450 = vpack.c.bf16 %v429, %v429
    %v451 = vpack.c.bf16 %v431, %v431
    %v452 = vpack.c.bf16 %v434, %v434
    %v453 = vpack.c.bf16 %v436, %v436
    %454 = vst [vmem:[%s4] sm:$0xf] %v438
    %455 = vst [vmem:[%s4 + $0x4] sm:$0xf] %v439
    %456 = vst [vmem:[%s4 + $0x8] sm:$0xf] %v440
    %457 = vst [vmem:[%s4 + $0xc] sm:$0xf] %v441
    %458 = vst [vmem:[%s4 + $0x10] sm:$0xf] %v442
    %459 = vst [vmem:[%s4 + $0x14] sm:$0xf] %v443
    %460 = vst [vmem:[%s4 + $0x18] sm:$0xf] %v444
    %461 = vst [vmem:[%s4 + $0x1c] sm:$0xf] %v445
    %462 = vst [vmem:[%s4 + $0x20] sm:$0xf] %v446
    %463 = vst [vmem:[%s4 + $0x24] sm:$0xf] %v447
    %464 = vst [vmem:[%s4 + $0x28] sm:$0xf] %v448
    %465 = vst [vmem:[%s4 + $0x2c] sm:$0xf] %v449
    %466 = vst [vmem:[%s4 + $0x30] sm:$0xf] %v450
    %467 = vst [vmem:[%s4 + $0x34] sm:$0xf] %v451
    %468 = vst [vmem:[%s4 + $0x38] sm:$0xf] %v452
    %469 = vst [vmem:[%s4 + $0x3c] sm:$0xf] %v453
  $region25: #{_gcn_forward_impl.4} parent=0 // pred_fallthru
    _
  // Predicated region
  $region26: #{_gcn_forward_impl.4} parent=0 // pred_check
    _
  $region27: #{_gcn_forward_impl.4} parent=0 // pred_check_branch
    %471 = sbr.rel (0) target = $region29
  $region28: #{_gcn_forward_impl.4} parent=0 // pred_region
    _
  $region29: #{_gcn_forward_impl.4} parent=0 // pred_fallthru
    _
  // Predicated region
  $region30: #{_gcn_forward_impl.4} parent=0 // pred_check
    _
  $region31: #{_gcn_forward_impl.4} parent=0 // pred_check_branch
    %473 = sbr.rel (0) target = $region33
  $region32: #{_gcn_forward_impl.4} parent=0 // pred_region
    _
  $region33: #{_gcn_forward_impl.4} parent=0 // pred_fallthru
    _

// kernel: _gcn_forward_impl.5
$region0: #{_gcn_forward_impl.5}
  #allocation0 [shape = 'u32[]', space=smem, size = 0x4, offset = 0x4, fixed_abs, tag = 'smem constant byte address 0x4 - core index']
  #allocation1 [shape = 'u32[72,128]{1,0:T(1,128)}', space=vmem, size = 0x9000, scoped, tag = 'internal scratch']
  #allocation2 [shape = 'f32[128,128]{1,0:T(8,128)}', space=vmem, size = 0x10000, scoped, tag = 'scratch operand']
  %s0 = inlined_call_operand.vmem [shape: bf16[128,128], index: 0, kind: input, shape index: {}]
  %s1 = inlined_call_operand.vmem [shape: bf16[128,128], index: 1, kind: input, shape index: {}]
  %s2 = inlined_call_operand.vmem [shape: f32[1,128], index: 2, kind: input, shape index: {}]
  %s3 = inlined_call_operand.vmem [shape: f32[128,128], index: 3, kind: output, shape index: {0}]
  %s4 = inlined_call_operand.vmem [shape: f32[128,128], index: 4, kind: output, shape index: {1}]
  %5 = xla_tuple %s3, %s4
  %s6 = sld [smem:[#allocation0]]
  $region38: #{_gcn_forward_impl.5} parent=0
    _
  %s8 = ssub.s32 1, %s6
  %s9 = scalar_select 0, %s8, %s6
  // Predicated region
  $region2: #{_gcn_forward_impl.5} parent=0 // pred_check
    _
  $region3: #{_gcn_forward_impl.5} parent=0 // pred_check_branch
    %11 = sbr.rel (0) target = $region5
  $region4: #{_gcn_forward_impl.5} parent=0 // pred_region
    _
  $region5: #{_gcn_forward_impl.5} parent=0 // pred_fallthru
    _
  // Predicated region
  $region6: #{_gcn_forward_impl.5} parent=0 // pred_check
    _
  $region7: #{_gcn_forward_impl.5} parent=0 // pred_check_branch
    %13 = sbr.rel (0) target = $region9
  $region8: #{_gcn_forward_impl.5} parent=0 // pred_region
    _
  $region9: #{_gcn_forward_impl.5} parent=0 // pred_fallthru
    _
  // Predicated region
  $region10: #{_gcn_forward_impl.5} parent=0 // pred_check
    _
  $region11: #{_gcn_forward_impl.5} parent=0 // pred_check_branch
    %15 = sbr.rel (0) target = $region13
  $region12: #{_gcn_forward_impl.5} parent=0 // pred_region
    _
  $region13: #{_gcn_forward_impl.5} parent=0 // pred_fallthru
    _
  %p16 = scmp.eq.s32.totalorder 0, 0
  // Predicated region
  $region14: #{_gcn_forward_impl.5} parent=0 // pred_check
    %p17 = pneg %p16
  $region15: #{_gcn_forward_impl.5} parent=0 // pred_check_branch
    %19 = sbr.rel (%p17) target = $region17
  $region16: #{_gcn_forward_impl.5} parent=0 // pred_region
    %20 = vst [vmem:[#allocation2] sm:$0xff] 0.0
    %21 = vst [vmem:[#allocation2 + $0x8] sm:$0xff] 0.0
    %22 = vst [vmem:[#allocation2 + $0x10] sm:$0xff] 0.0
    %23 = vst [vmem:[#allocation2 + $0x18] sm:$0xff] 0.0
    %24 = vst [vmem:[#allocation2 + $0x20] sm:$0xff] 0.0
    %25 = vst [vmem:[#allocation2 + $0x28] sm:$0xff] 0.0
    %26 = vst [vmem:[#allocation2 + $0x30] sm:$0xff] 0.0
    %27 = vst [vmem:[#allocation2 + $0x38] sm:$0xff] 0.0
    %28 = vst [vmem:[#allocation2 + $0x40] sm:$0xff] 0.0
    %29 = vst [vmem:[#allocation2 + $0x48] sm:$0xff] 0.0
    %30 = vst [vmem:[#allocation2 + $0x50] sm:$0xff] 0.0
    %31 = vst [vmem:[#allocation2 + $0x58] sm:$0xff] 0.0
    %32 = vst [vmem:[#allocation2 + $0x60] sm:$0xff] 0.0
    %33 = vst [vmem:[#allocation2 + $0x68] sm:$0xff] 0.0
    %34 = vst [vmem:[#allocation2 + $0x70] sm:$0xff] 0.0
    %35 = vst [vmem:[#allocation2 + $0x78] sm:$0xff] 0.0
  $region17: #{_gcn_forward_impl.5} parent=0 // pred_fallthru
    _
  %v36 = vld [vmem:[#allocation2] sm:$0xff]
  %v37 = vld [vmem:[#allocation2 + $0x8] sm:$0xff]
  %v38 = vld [vmem:[#allocation2 + $0x10] sm:$0xff]
  %v39 = vld [vmem:[#allocation2 + $0x18] sm:$0xff]
  %v40 = vld [vmem:[#allocation2 + $0x20] sm:$0xff]
  %v41 = vld [vmem:[#allocation2 + $0x28] sm:$0xff]
  %v42 = vld [vmem:[#allocation2 + $0x30] sm:$0xff]
  %v43 = vld [vmem:[#allocation2 + $0x38] sm:$0xff]
  %v44 = vld [vmem:[#allocation2 + $0x40] sm:$0xff]
  %v45 = vld [vmem:[#allocation2 + $0x48] sm:$0xff]
  %v46 = vld [vmem:[#allocation2 + $0x50] sm:$0xff]
  %v47 = vld [vmem:[#allocation2 + $0x58] sm:$0xff]
  %v48 = vld [vmem:[#allocation2 + $0x60] sm:$0xff]
  %v49 = vld [vmem:[#allocation2 + $0x68] sm:$0xff]
  %v50 = vld [vmem:[#allocation2 + $0x70] sm:$0xff]
  %v51 = vld [vmem:[#allocation2 + $0x78] sm:$0xff]
  %v52 = vld [vmem:[%s0] sm:$0xf]
  %v53 = vld [vmem:[%s0 + $0x4] sm:$0xf]
  %v54 = vld [vmem:[%s0 + $0x8] sm:$0xf]
  %v55 = vld [vmem:[%s0 + $0xc] sm:$0xf]
  %v56 = vld [vmem:[%s0 + $0x10] sm:$0xf]
  %v57 = vld [vmem:[%s0 + $0x14] sm:$0xf]
  %v58 = vld [vmem:[%s0 + $0x18] sm:$0xf]
  %v59 = vld [vmem:[%s0 + $0x1c] sm:$0xf]
  %v60 = vld [vmem:[%s0 + $0x20] sm:$0xf]
  %v61 = vld [vmem:[%s0 + $0x24] sm:$0xf]
  %v62 = vld [vmem:[%s0 + $0x28] sm:$0xf]
  %v63 = vld [vmem:[%s0 + $0x2c] sm:$0xf]
  %v64 = vld [vmem:[%s0 + $0x30] sm:$0xf]
  %v65 = vld [vmem:[%s0 + $0x34] sm:$0xf]
  %v66 = vld [vmem:[%s0 + $0x38] sm:$0xf]
  %v67 = vld [vmem:[%s0 + $0x3c] sm:$0xf]
  %v68 = vld [vmem:[%s1] sm:$0xf]
  %v69 = vld [vmem:[%s1 + $0x4] sm:$0xf]
  %v70 = vld [vmem:[%s1 + $0x8] sm:$0xf]
  %v71 = vld [vmem:[%s1 + $0xc] sm:$0xf]
  %v72 = vld [vmem:[%s1 + $0x10] sm:$0xf]
  %v73 = vld [vmem:[%s1 + $0x14] sm:$0xf]
  %v74 = vld [vmem:[%s1 + $0x18] sm:$0xf]
  %v75 = vld [vmem:[%s1 + $0x1c] sm:$0xf]
  %v76 = vld [vmem:[%s1 + $0x20] sm:$0xf]
  %v77 = vld [vmem:[%s1 + $0x24] sm:$0xf]
  %v78 = vld [vmem:[%s1 + $0x28] sm:$0xf]
  %v79 = vld [vmem:[%s1 + $0x2c] sm:$0xf]
  %v80 = vld [vmem:[%s1 + $0x30] sm:$0xf]
  %v81 = vld [vmem:[%s1 + $0x34] sm:$0xf]
  %v82 = vld [vmem:[%s1 + $0x38] sm:$0xf]
  %v83 = vld [vmem:[%s1 + $0x3c] sm:$0xf]
  %v100 = vunpack.c.l.b16 %v52
  %v101 = vunpack.c.l.b16 %v53
  %v102 = vunpack.c.l.b16 %v54
  %v103 = vunpack.c.l.b16 %v55
  %v104 = vunpack.c.l.b16 %v56
  %v105 = vunpack.c.l.b16 %v57
  %v106 = vunpack.c.l.b16 %v58
  %v107 = vunpack.c.l.b16 %v59
  %v108 = vunpack.c.l.b16 %v60
  %v109 = vunpack.c.l.b16 %v61
  %v110 = vunpack.c.l.b16 %v62
  %v111 = vunpack.c.l.b16 %v63
  %v112 = vunpack.c.l.b16 %v64
  %v113 = vunpack.c.l.b16 %v65
  %v114 = vunpack.c.l.b16 %v66
  %v115 = vunpack.c.l.b16 %v67
  %v116 = vpack.c.b16 %v101, %v100
  %v117 = vpack.c.b16 %v103, %v102
  %v118 = vpack.c.b16 %v105, %v104
  %v119 = vpack.c.b16 %v107, %v106
  %v120 = vpack.c.b16 %v109, %v108
  %v121 = vpack.c.b16 %v111, %v110
  %v122 = vpack.c.b16 %v113, %v112
  %v123 = vpack.c.b16 %v115, %v114
  %v148 = vunpack.c.l.b16 %v68
  %v149 = vunpack.c.l.b16 %v69
  %v150 = vunpack.c.l.b16 %v70
  %v151 = vunpack.c.l.b16 %v71
  %v152 = vunpack.c.l.b16 %v72
  %v153 = vunpack.c.l.b16 %v73
  %v154 = vunpack.c.l.b16 %v74
  %v155 = vunpack.c.l.b16 %v75
  %v156 = vunpack.c.l.b16 %v76
  %v157 = vunpack.c.l.b16 %v77
  %v158 = vunpack.c.l.b16 %v78
  %v159 = vunpack.c.l.b16 %v79
  %v160 = vunpack.c.l.b16 %v80
  %v161 = vunpack.c.l.b16 %v81
  %v162 = vunpack.c.l.b16 %v82
  %v163 = vunpack.c.l.b16 %v83
  %v164 = vpack.c.b16 %v149, %v148
  %v165 = vpack.c.b16 %v151, %v150
  %v166 = vpack.c.b16 %v153, %v152
  %v167 = vpack.c.b16 %v155, %v154
  %v168 = vpack.c.b16 %v157, %v156
  %v169 = vpack.c.b16 %v159, %v158
  %v170 = vpack.c.b16 %v161, %v160
  %v171 = vpack.c.b16 %v163, %v162
  %180 = vmatpush.bf16.msra.mxu0 %v171
  %181 = vmatpush.bf16.msra.mxu0 %v170
  %182 = vmatpush.bf16.msra.mxu0 %v169
  %183 = vmatpush.bf16.msra.mxu0 %v168
  %184 = vmatpush.bf16.msra.mxu0 %v167
  %185 = vmatpush.bf16.msra.mxu0 %v166
  %186 = vmatpush.bf16.msra.mxu0 %v165
  %187 = vmatpush.bf16.msra.mxu0 %v164
  %188 = vmatmul.bf16.gmra.mxu0 %v116
  %v189 = vpop.f32.mrf.mxu0
  %v190 = vadd.f32 0.0, %v189
  %v191 = vpop.f32.mrf.mxu0
  %v192 = vadd.f32 0.0, %v191
  %193 = vmatmul.bf16.gmra.mxu0 %v117
  %v194 = vpop.f32.mrf.mxu0
  %v195 = vadd.f32 0.0, %v194
  %v196 = vpop.f32.mrf.mxu0
  %v197 = vadd.f32 0.0, %v196
  %198 = vmatmul.bf16.gmra.mxu0 %v118
  %v199 = vpop.f32.mrf.mxu0
  %v200 = vadd.f32 0.0, %v199
  %v201 = vpop.f32.mrf.mxu0
  %v202 = vadd.f32 0.0, %v201
  %203 = vmatmul.bf16.gmra.mxu0 %v119
  %v204 = vpop.f32.mrf.mxu0
  %v205 = vadd.f32 0.0, %v204
  %v206 = vpop.f32.mrf.mxu0
  %v207 = vadd.f32 0.0, %v206
  %208 = vmatmul.bf16.gmra.mxu0 %v120
  %v209 = vpop.f32.mrf.mxu0
  %v210 = vadd.f32 0.0, %v209
  %v211 = vpop.f32.mrf.mxu0
  %v212 = vadd.f32 0.0, %v211
  %213 = vmatmul.bf16.gmra.mxu0 %v121
  %v214 = vpop.f32.mrf.mxu0
  %v215 = vadd.f32 0.0, %v214
  %v216 = vpop.f32.mrf.mxu0
  %v217 = vadd.f32 0.0, %v216
  %218 = vmatmul.bf16.gmra.mxu0 %v122
  %v219 = vpop.f32.mrf.mxu0
  %v220 = vadd.f32 0.0, %v219
  %v221 = vpop.f32.mrf.mxu0
  %v222 = vadd.f32 0.0, %v221
  %223 = vmatmul.bf16.gmra.mxu0 %v123
  %v224 = vpop.f32.mrf.mxu0
  %v225 = vadd.f32 0.0, %v224
  %v226 = vpop.f32.mrf.mxu0
  %v227 = vadd.f32 0.0, %v226
  %228 = vdwg.mxu0
  %v229 = vadd.f32 %v36, %v190
  %v230 = vadd.f32 %v37, %v192
  %v231 = vadd.f32 %v38, %v195
  %v232 = vadd.f32 %v39, %v197
  %v233 = vadd.f32 %v40, %v200
  %v234 = vadd.f32 %v41, %v202
  %v235 = vadd.f32 %v42, %v205
  %v236 = vadd.f32 %v43, %v207
  %v237 = vadd.f32 %v44, %v210
  %v238 = vadd.f32 %v45, %v212
  %v239 = vadd.f32 %v46, %v215
  %v240 = vadd.f32 %v47, %v217
  %v241 = vadd.f32 %v48, %v220
  %v242 = vadd.f32 %v49, %v222
  %v243 = vadd.f32 %v50, %v225
  %v244 = vadd.f32 %v51, %v227
  %245 = vst [vmem:[#allocation2] sm:$0xff] %v229
  %246 = vst [vmem:[#allocation2 + $0x8] sm:$0xff] %v230
  %247 = vst [vmem:[#allocation2 + $0x10] sm:$0xff] %v231
  %248 = vst [vmem:[#allocation2 + $0x18] sm:$0xff] %v232
  %249 = vst [vmem:[#allocation2 + $0x20] sm:$0xff] %v233
  %250 = vst [vmem:[#allocation2 + $0x28] sm:$0xff] %v234
  %251 = vst [vmem:[#allocation2 + $0x30] sm:$0xff] %v235
  %252 = vst [vmem:[#allocation2 + $0x38] sm:$0xff] %v236
  %253 = vst [vmem:[#allocation2 + $0x40] sm:$0xff] %v237
  %254 = vst [vmem:[#allocation2 + $0x48] sm:$0xff] %v238
  %255 = vst [vmem:[#allocation2 + $0x50] sm:$0xff] %v239
  %256 = vst [vmem:[#allocation2 + $0x58] sm:$0xff] %v240
  %257 = vst [vmem:[#allocation2 + $0x60] sm:$0xff] %v241
  %258 = vst [vmem:[#allocation2 + $0x68] sm:$0xff] %v242
  %259 = vst [vmem:[#allocation2 + $0x70] sm:$0xff] %v243
  %260 = vst [vmem:[#allocation2 + $0x78] sm:$0xff] %v244
  // Predicated region
  $region18: #{_gcn_forward_impl.5} parent=0 // pred_check
    %p261 = pneg %p16
  $region19: #{_gcn_forward_impl.5} parent=0 // pred_check_branch
    %263 = sbr.rel (%p261) target = $region21
  $region20: #{_gcn_forward_impl.5} parent=0 // pred_region
    %v264 = vld [vmem:[#allocation2] sm:$0xff]
    %v265 = vld [vmem:[#allocation2 + $0x8] sm:$0xff]
    %v266 = vld [vmem:[#allocation2 + $0x10] sm:$0xff]
    %v267 = vld [vmem:[#allocation2 + $0x18] sm:$0xff]
    %v268 = vld [vmem:[#allocation2 + $0x20] sm:$0xff]
    %v269 = vld [vmem:[#allocation2 + $0x28] sm:$0xff]
    %v270 = vld [vmem:[#allocation2 + $0x30] sm:$0xff]
    %v271 = vld [vmem:[#allocation2 + $0x38] sm:$0xff]
    %v272 = vld [vmem:[#allocation2 + $0x40] sm:$0xff]
    %v273 = vld [vmem:[#allocation2 + $0x48] sm:$0xff]
    %v274 = vld [vmem:[#allocation2 + $0x50] sm:$0xff]
    %v275 = vld [vmem:[#allocation2 + $0x58] sm:$0xff]
    %v276 = vld [vmem:[#allocation2 + $0x60] sm:$0xff]
    %v277 = vld [vmem:[#allocation2 + $0x68] sm:$0xff]
    %v278 = vld [vmem:[#allocation2 + $0x70] sm:$0xff]
    %v279 = vld [vmem:[#allocation2 + $0x78] sm:$0xff]
    %v280 = vld [vmem:[%s2] sm:$0x1]
    %v282 = vperm.slane %v280, 0
    %v284 = vadd.f32 %v264, %v282
    %v285 = vadd.f32 %v265, %v282
    %v286 = vadd.f32 %v266, %v282
    %v287 = vadd.f32 %v267, %v282
    %v288 = vadd.f32 %v268, %v282
    %v289 = vadd.f32 %v269, %v282
    %v290 = vadd.f32 %v270, %v282
    %v291 = vadd.f32 %v271, %v282
    %v292 = vadd.f32 %v272, %v282
    %v293 = vadd.f32 %v273, %v282
    %v294 = vadd.f32 %v274, %v282
    %v295 = vadd.f32 %v275, %v282
    %v296 = vadd.f32 %v276, %v282
    %v297 = vadd.f32 %v277, %v282
    %v298 = vadd.f32 %v278, %v282
    %v299 = vadd.f32 %v279, %v282
    %300 = vst [vmem:[%s3] sm:$0xff] %v284
    %301 = vst [vmem:[%s3 + $0x8] sm:$0xff] %v285
    %302 = vst [vmem:[%s3 + $0x10] sm:$0xff] %v286
    %303 = vst [vmem:[%s3 + $0x18] sm:$0xff] %v287
    %304 = vst [vmem:[%s3 + $0x20] sm:$0xff] %v288
    %305 = vst [vmem:[%s3 + $0x28] sm:$0xff] %v289
    %306 = vst [vmem:[%s3 + $0x30] sm:$0xff] %v290
    %307 = vst [vmem:[%s3 + $0x38] sm:$0xff] %v291
    %308 = vst [vmem:[%s3 + $0x40] sm:$0xff] %v292
    %309 = vst [vmem:[%s3 + $0x48] sm:$0xff] %v293
    %310 = vst [vmem:[%s3 + $0x50] sm:$0xff] %v294
    %311 = vst [vmem:[%s3 + $0x58] sm:$0xff] %v295
    %312 = vst [vmem:[%s3 + $0x60] sm:$0xff] %v296
    %313 = vst [vmem:[%s3 + $0x68] sm:$0xff] %v297
    %314 = vst [vmem:[%s3 + $0x70] sm:$0xff] %v298
    %315 = vst [vmem:[%s3 + $0x78] sm:$0xff] %v299
    %v316 = vlaneseq
    %v317 = vand.u32 %v316, 127
    %vm318 = vcmp.lt.s32.totalorder %v317, 4
    %v319 = vsel %vm318, %v284, -inf
    %v320 = vsel %vm318, %v285, -inf
    %v321 = vsel %vm318, %v286, -inf
    %v322 = vsel %vm318, %v287, -inf
    %v323 = vsel %vm318, %v288, -inf
    %v324 = vsel %vm318, %v289, -inf
    %v325 = vsel %vm318, %v290, -inf
    %v326 = vsel %vm318, %v291, -inf
    %v327 = vsel %vm318, %v292, -inf
    %v328 = vsel %vm318, %v293, -inf
    %v329 = vsel %vm318, %v294, -inf
    %v330 = vsel %vm318, %v295, -inf
    %v331 = vsel %vm318, %v296, -inf
    %v332 = vsel %vm318, %v297, -inf
    %v333 = vsel %vm318, %v298, -inf
    %v334 = vsel %vm318, %v299, -inf
    %335 = vmax.xlane.f32.xlu0 %v319
    %v336 = vpop.xlane.xlu0 %335
    %337 = vmax.xlane.f32.xlu0 %v320
    %v338 = vpop.xlane.xlu0 %337
    %339 = vmax.xlane.f32.xlu0 %v321
    %v340 = vpop.xlane.xlu0 %339
    %341 = vmax.xlane.f32.xlu0 %v322
    %v342 = vpop.xlane.xlu0 %341
    %343 = vmax.xlane.f32.xlu0 %v323
    %v344 = vpop.xlane.xlu0 %343
    %345 = vmax.xlane.f32.xlu0 %v324
    %v346 = vpop.xlane.xlu0 %345
    %347 = vmax.xlane.f32.xlu0 %v325
    %v348 = vpop.xlane.xlu0 %347
    %349 = vmax.xlane.f32.xlu0 %v326
    %v350 = vpop.xlane.xlu0 %349
    %351 = vmax.xlane.f32.xlu0 %v327
    %v352 = vpop.xlane.xlu0 %351
    %353 = vmax.xlane.f32.xlu0 %v328
    %v354 = vpop.xlane.xlu0 %353
    %355 = vmax.xlane.f32.xlu0 %v329
    %v356 = vpop.xlane.xlu0 %355
    %357 = vmax.xlane.f32.xlu0 %v330
    %v358 = vpop.xlane.xlu0 %357
    %359 = vmax.xlane.f32.xlu0 %v331
    %v360 = vpop.xlane.xlu0 %359
    %361 = vmax.xlane.f32.xlu0 %v332
    %v362 = vpop.xlane.xlu0 %361
    %363 = vmax.xlane.f32.xlu0 %v333
    %v364 = vpop.xlane.xlu0 %363
    %365 = vmax.xlane.f32.xlu0 %v334
    %v366 = vpop.xlane.xlu0 %365
    %v367 = vsub.f32 %v284, %v336
    %v368 = vsub.f32 %v285, %v338
    %v369 = vsub.f32 %v286, %v340
    %v370 = vsub.f32 %v287, %v342
    %v371 = vsub.f32 %v288, %v344
    %v372 = vsub.f32 %v289, %v346
    %v373 = vsub.f32 %v290, %v348
    %v374 = vsub.f32 %v291, %v350
    %v375 = vsub.f32 %v292, %v352
    %v376 = vsub.f32 %v293, %v354
    %v377 = vsub.f32 %v294, %v356
    %v378 = vsub.f32 %v295, %v358
    %v379 = vsub.f32 %v296, %v360
    %v380 = vsub.f32 %v297, %v362
    %v381 = vsub.f32 %v298, %v364
    %v382 = vsub.f32 %v299, %v366
    %v383 = vmul.f32 %v367, 1.442695
    %v384 = vpow.pop %v383
    %v385 = vmul.f32 %v368, 1.442695
    %v386 = vpow.pop %v385
    %v387 = vmul.f32 %v369, 1.442695
    %v388 = vpow.pop %v387
    %v389 = vmul.f32 %v370, 1.442695
    %v390 = vpow.pop %v389
    %v391 = vmul.f32 %v371, 1.442695
    %v392 = vpow.pop %v391
    %v393 = vmul.f32 %v372, 1.442695
    %v394 = vpow.pop %v393
    %v395 = vmul.f32 %v373, 1.442695
    %v396 = vpow.pop %v395
    %v397 = vmul.f32 %v374, 1.442695
    %v398 = vpow.pop %v397
    %v399 = vmul.f32 %v375, 1.442695
    %v400 = vpow.pop %v399
    %v401 = vmul.f32 %v376, 1.442695
    %v402 = vpow.pop %v401
    %v403 = vmul.f32 %v377, 1.442695
    %v404 = vpow.pop %v403
    %v405 = vmul.f32 %v378, 1.442695
    %v406 = vpow.pop %v405
    %v407 = vmul.f32 %v379, 1.442695
    %v408 = vpow.pop %v407
    %v409 = vmul.f32 %v380, 1.442695
    %v410 = vpow.pop %v409
    %v411 = vmul.f32 %v381, 1.442695
    %v412 = vpow.pop %v411
    %v413 = vmul.f32 %v382, 1.442695
    %v414 = vpow.pop %v413
    %v415 = vsel %vm318, %v384, 0.0
    %v416 = vsel %vm318, %v386, 0.0
    %v417 = vsel %vm318, %v388, 0.0
    %v418 = vsel %vm318, %v390, 0.0
    %v419 = vsel %vm318, %v392, 0.0
    %v420 = vsel %vm318, %v394, 0.0
    %v421 = vsel %vm318, %v396, 0.0
    %v422 = vsel %vm318, %v398, 0.0
    %v423 = vsel %vm318, %v400, 0.0
    %v424 = vsel %vm318, %v402, 0.0
    %v425 = vsel %vm318, %v404, 0.0
    %v426 = vsel %vm318, %v406, 0.0
    %v427 = vsel %vm318, %v408, 0.0
    %v428 = vsel %vm318, %v410, 0.0
    %v429 = vsel %vm318, %v412, 0.0
    %v430 = vsel %vm318, %v414, 0.0
    %431 = vadd.xlane.f32.xlu0 %v415
    %v432 = vpop.xlane.xlu0 %431
    %433 = vadd.xlane.f32.xlu0 %v416
    %v434 = vpop.xlane.xlu0 %433
    %435 = vadd.xlane.f32.xlu0 %v417
    %v436 = vpop.xlane.xlu0 %435
    %437 = vadd.xlane.f32.xlu0 %v418
    %v438 = vpop.xlane.xlu0 %437
    %439 = vadd.xlane.f32.xlu0 %v419
    %v440 = vpop.xlane.xlu0 %439
    %441 = vadd.xlane.f32.xlu0 %v420
    %v442 = vpop.xlane.xlu0 %441
    %443 = vadd.xlane.f32.xlu0 %v421
    %v444 = vpop.xlane.xlu0 %443
    %445 = vadd.xlane.f32.xlu0 %v422
    %v446 = vpop.xlane.xlu0 %445
    %447 = vadd.xlane.f32.xlu0 %v423
    %v448 = vpop.xlane.xlu0 %447
    %449 = vadd.xlane.f32.xlu0 %v424
    %v450 = vpop.xlane.xlu0 %449
    %451 = vadd.xlane.f32.xlu0 %v425
    %v452 = vpop.xlane.xlu0 %451
    %453 = vadd.xlane.f32.xlu0 %v426
    %v454 = vpop.xlane.xlu0 %453
    %455 = vadd.xlane.f32.xlu0 %v427
    %v456 = vpop.xlane.xlu0 %455
    %457 = vadd.xlane.f32.xlu0 %v428
    %v458 = vpop.xlane.xlu0 %457
    %459 = vadd.xlane.f32.xlu0 %v429
    %v460 = vpop.xlane.xlu0 %459
    %461 = vadd.xlane.f32.xlu0 %v430
    %v462 = vpop.xlane.xlu0 %461
    %v463 = vlog2.pop %v432
    %v464 = vmul.f32 %v463, 0.6931472
    %v465 = vlog2.pop %v434
    %v466 = vmul.f32 %v465, 0.6931472
    %v467 = vlog2.pop %v436
    %v468 = vmul.f32 %v467, 0.6931472
    %v469 = vlog2.pop %v438
    %v470 = vmul.f32 %v469, 0.6931472
    %v471 = vlog2.pop %v440
    %v472 = vmul.f32 %v471, 0.6931472
    %v473 = vlog2.pop %v442
    %v474 = vmul.f32 %v473, 0.6931472
    %v475 = vlog2.pop %v444
    %v476 = vmul.f32 %v475, 0.6931472
    %v477 = vlog2.pop %v446
    %v478 = vmul.f32 %v477, 0.6931472
    %v479 = vlog2.pop %v448
    %v480 = vmul.f32 %v479, 0.6931472
    %v481 = vlog2.pop %v450
    %v482 = vmul.f32 %v481, 0.6931472
    %v483 = vlog2.pop %v452
    %v484 = vmul.f32 %v483, 0.6931472
    %v485 = vlog2.pop %v454
    %v486 = vmul.f32 %v485, 0.6931472
    %v487 = vlog2.pop %v456
    %v488 = vmul.f32 %v487, 0.6931472
    %v489 = vlog2.pop %v458
    %v490 = vmul.f32 %v489, 0.6931472
    %v491 = vlog2.pop %v460
    %v492 = vmul.f32 %v491, 0.6931472
    %v493 = vlog2.pop %v462
    %v494 = vmul.f32 %v493, 0.6931472
    %v495 = vsub.f32 %v367, %v464
    %v496 = vsub.f32 %v368, %v466
    %v497 = vsub.f32 %v369, %v468
    %v498 = vsub.f32 %v370, %v470
    %v499 = vsub.f32 %v371, %v472
    %v500 = vsub.f32 %v372, %v474
    %v501 = vsub.f32 %v373, %v476
    %v502 = vsub.f32 %v374, %v478
    %v503 = vsub.f32 %v375, %v480
    %v504 = vsub.f32 %v376, %v482
    %v505 = vsub.f32 %v377, %v484
    %v506 = vsub.f32 %v378, %v486
    %v507 = vsub.f32 %v379, %v488
    %v508 = vsub.f32 %v380, %v490
    %v509 = vsub.f32 %v381, %v492
    %v510 = vsub.f32 %v382, %v494
    %511 = vst [vmem:[%s4] sm:$0xff] %v495
    %512 = vst [vmem:[%s4 + $0x8] sm:$0xff] %v496
    %513 = vst [vmem:[%s4 + $0x10] sm:$0xff] %v497
    %514 = vst [vmem:[%s4 + $0x18] sm:$0xff] %v498
    %515 = vst [vmem:[%s4 + $0x20] sm:$0xff] %v499
    %516 = vst [vmem:[%s4 + $0x28] sm:$0xff] %v500
    %517 = vst [vmem:[%s4 + $0x30] sm:$0xff] %v501
    %518 = vst [vmem:[%s4 + $0x38] sm:$0xff] %v502
    %519 = vst [vmem:[%s4 + $0x40] sm:$0xff] %v503
    %520 = vst [vmem:[%s4 + $0x48] sm:$0xff] %v504
    %521 = vst [vmem:[%s4 + $0x50] sm:$0xff] %v505
    %522 = vst [vmem:[%s4 + $0x58] sm:$0xff] %v506
    %523 = vst [vmem:[%s4 + $0x60] sm:$0xff] %v507
    %524 = vst [vmem:[%s4 + $0x68] sm:$0xff] %v508
    %525 = vst [vmem:[%s4 + $0x70] sm:$0xff] %v509
    %526 = vst [vmem:[%s4 + $0x78] sm:$0xff] %v510
  $region21: #{_gcn_forward_impl.5} parent=0 // pred_fallthru
    _
  // Predicated region
  $region22: #{_gcn_forward_impl.5} parent=0 // pred_check
    _
  $region23: #{_gcn_forward_impl.5} parent=0 // pred_check_branch
    %528 = sbr.rel (0) target = $region25
  $region24: #{_gcn_forward_impl.5} parent=0 // pred_region
    _
  $region25: #{_gcn_forward_impl.5} parent=0 // pred_fallthru
    _
  // Predicated region
  $region26: #{_gcn_forward_impl.5} parent=0 // pred_check
    _
  $region27: #{_gcn_forward_impl.5} parent=0 // pred_check_branch
    %530 = sbr.rel (0) target = $region29
  $region28: #{_gcn_forward_impl.5} parent=0 // pred_region
    _
  $region29: #{_gcn_forward_impl.5} parent=0 // pred_fallthru
    _
  // Predicated region
  $region30: #{_gcn_forward_impl.5} parent=0 // pred_check
    _
  $region31: #{_gcn_forward_impl.5} parent=0 // pred_check_branch
    %532 = sbr.rel (0) target = $region33
  $region32: #{_gcn_forward_impl.5} parent=0 // pred_region
    _
  $region33: #{_gcn_forward_impl.5} parent=0 // pred_fallthru
    _
  // Predicated region
  $region34: #{_gcn_forward_impl.5} parent=0 // pred_check
    _
  $region35: #{_gcn_forward_impl.5} parent=0 // pred_check_branch
    %534 = sbr.rel (0) target = $region37
  $region36: #{_gcn_forward_impl.5} parent=0 // pred_region
    _
  $region37: #{_gcn_forward_impl.5} parent=0 // pred_fallthru
    _

</llo_original>
